<compile_context>
chip_gen: v7x
topology: tpu7x:2x2x1
jax: 0.10.0
libtpu: 0.0.40
codegen_flags: <defaults>
</compile_context>

<pallas_src>
import functools

import numpy as np

import jax
import jax.numpy as jnp
from jax.experimental import pallas as pl
from jax.experimental.pallas import tpu as pltpu


def _round_up(x, m):
    return ((x + m - 1) // m) * m


# 48 MiB: above the 16/32 MiB scoped defaults of v5e/v6e, below v7x's 64 MiB
# physical VMEM.  Worst-case live VMEM per grid step at the default tiles is
# ~12 MiB of one-hot intermediates plus a few KiB of double-buffered blocks.
_VMEM_LIMIT = 48 * 1024 * 1024


# ----------------------------------------------------------------------------
# Kernel 1: per-edge incidence with the current seed membership vector.
#   idct[e] = remaining[e] & (member[rows[e]] | member[cols[e]])
# grid = (E tiles [parallel], node-id chunks [arbitrary]); the lane-dense
# (1, tile_e) output block is held across the chunk axis as the accumulator.
# The membership "gather" is a bf16 MXU matvec against a combined one-hot.
# ----------------------------------------------------------------------------
def _incidence_kernel(rows_ref, cols_ref, rem_ref, member_ref, idct_ref):
    j = pl.program_id(1)

    @pl.when(j == 0)
    def _():
        idct_ref[...] = jnp.zeros_like(idct_ref)

    chunk = member_ref.shape[1]
    rows = rows_ref[...]                       # (1, tile_e) int32, lane-dense
    cols = cols_ref[...]
    # node ids of this chunk on the sublane axis; the compares broadcast it
    # against the lane-dense edge vectors (no (tile_e, chunk) iota).
    ids = j * chunk + jax.lax.broadcasted_iota(jnp.int32, (chunk, 1), 0)
    hit = (rows == ids) | (cols == ids)        # (chunk, tile_e) combined one-hot
    # compares/selects stay f32 on the VPU (v5e has no bf16 VALU); the one-hot
    # is cast to bf16 only at the MXU (0/1 exact in bf16, accumulation in f32).
    hit_bf = jnp.where(hit, 1.0, 0.0).astype(jnp.bfloat16)
    member_bf = member_ref[...].astype(jnp.bfloat16)
    idct_ref[...] += jax.lax.dot_general(
        member_bf, hit_bf,
        dimension_numbers=(((1,), (0,)), ((), ())),
        preferred_element_type=jnp.float32)

    @pl.when(j == pl.num_programs(1) - 1)
    def _():
        idct_ref[...] = jnp.where(
            (rem_ref[...] > 0.0) & (idct_ref[...] > 0.0), 1.0, 0.0)


def incidence_call(rows2, cols2, rem2, member2, tile_e, n_chunk):
    E_pad = rows2.shape[1]
    N_pad = member2.shape[1]
    grid = (E_pad // tile_e, N_pad // n_chunk)
    return pl.pallas_call(
        _incidence_kernel,
        out_shape=jax.ShapeDtypeStruct((1, E_pad), jnp.float32),
        grid=grid,
        in_specs=[
            pl.BlockSpec((1, tile_e), lambda i, j: (0, i)),
            pl.BlockSpec((1, tile_e), lambda i, j: (0, i)),
            pl.BlockSpec((1, tile_e), lambda i, j: (0, i)),
            pl.BlockSpec((1, n_chunk), lambda i, j: (0, j)),
        ],
        out_specs=pl.BlockSpec((1, tile_e), lambda i, j: (0, i)),
        compiler_params=pltpu.CompilerParams(
            dimension_semantics=("parallel", "arbitrary"),
            vmem_limit_bytes=_VMEM_LIMIT,
        ),
    )(rows2, cols2, rem2, member2)


# ----------------------------------------------------------------------------
# Kernel 2a: row degrees of the remaining adjacency (scatter-add as MXU dot).
#   deg[n] = sum_e keep[e] * (rows[e] == n)
# grid = (E splits [parallel], N chunks [parallel], E tiles [arbitrary]).
# The leading split axis keeps both v7x TensorCores busy even when the
# N-chunk axis is size 1; partial degrees are summed in glue.
# ----------------------------------------------------------------------------
def _degree_kernel(rows_ref, keep_ref, deg_ref):
    e = pl.program_id(2)

    @pl.when(e == 0)
    def _():
        deg_ref[...] = jnp.zeros_like(deg_ref)

    chunk = deg_ref.shape[2]
    n = pl.program_id(1)
    ids = n * chunk + jax.lax.broadcasted_iota(jnp.int32, (chunk, 1), 0)
    oh_bf = jnp.where(rows_ref[...] == ids, 1.0, 0.0).astype(jnp.bfloat16)
    keep_bf = keep_ref[...].astype(jnp.bfloat16)          # 0/1 -> exact in bf16
    # deg_chunk += keep @ one_hot^T: contract the edge (lane) dims on the MXU.
    part = jax.lax.dot_general(
        keep_bf, oh_bf,
        dimension_numbers=(((1,), (1,)), ((), ())),
        preferred_element_type=jnp.float32)               # (1, chunk)
    deg_ref[...] += part[None]


def degree_call(rows2, keep2, N_pad, tile_e, n_chunk, n_split):
    E_pad = rows2.shape[1]
    tiles_per_split = E_pad // (tile_e * n_split)
    grid = (n_split, N_pad // n_chunk, tiles_per_split)
    deg_parts = pl.pallas_call(
        _degree_kernel,
        out_shape=jax.ShapeDtypeStruct((n_split, 1, N_pad), jnp.float32),
        grid=grid,
        in_specs=[
            pl.BlockSpec((1, tile_e),
                         lambda s, n, e: (0, s * tiles_per_split + e)),
            pl.BlockSpec((1, tile_e),
                         lambda s, n, e: (0, s * tiles_per_split + e)),
        ],
        out_specs=pl.BlockSpec((1, 1, n_chunk), lambda s, n, e: (s, 0, n)),
        compiler_params=pltpu.CompilerParams(
            dimension_semantics=("parallel", "parallel", "arbitrary"),
            vmem_limit_bytes=_VMEM_LIMIT,
        ),
    )(rows2, keep2)
    return jnp.sum(deg_parts, axis=0)                     # (1, N_pad)


# ----------------------------------------------------------------------------
# Kernel 2b: per-edge normalized values.
#   vals[e] = keep[e] * dpow[rows[e]] * dpow[cols[e]]
# grid = (E tiles [parallel], N chunks [arbitrary]); rn/cn scratch accumulate
# the dpow gathers (hi/lo bf16 split keeps ~f32 accuracy on the bf16 MXU).
# ----------------------------------------------------------------------------
def _edgeval_kernel(rows_ref, cols_ref, keep_ref, dpow_ref, vals_ref,
                    rn_ref, cn_ref):
    j = pl.program_id(1)

    @pl.when(j == 0)
    def _():
        rn_ref[...] = jnp.zeros_like(rn_ref)
        cn_ref[...] = jnp.zeros_like(cn_ref)

    chunk = dpow_ref.shape[1]
    ids = j * chunk + jax.lax.broadcasted_iota(jnp.int32, (chunk, 1), 0)
    rows = rows_ref[...]
    cols = cols_ref[...]
    dpow = dpow_ref[...]                                   # (1, chunk) f32
    dpow_hi = dpow.astype(jnp.bfloat16)
    dpow_lo = (dpow - dpow_hi.astype(jnp.float32)).astype(jnp.bfloat16)
    oh_r = jnp.where(rows == ids, 1.0, 0.0).astype(jnp.bfloat16)
    oh_c = jnp.where(cols == ids, 1.0, 0.0).astype(jnp.bfloat16)

    dn = (((1,), (0,)), ((), ()))

    def gather(oh):
        hi = jax.lax.dot_general(dpow_hi, oh, dimension_numbers=dn,
                                 preferred_element_type=jnp.float32)
        lo = jax.lax.dot_general(dpow_lo, oh, dimension_numbers=dn,
                                 preferred_element_type=jnp.float32)
        return hi + lo                                     # (1, tile_e)

    rn_ref[...] += gather(oh_r)
    cn_ref[...] += gather(oh_c)

    @pl.when(j == pl.num_programs(1) - 1)
    def _():
        vals_ref[...] = keep_ref[...] * rn_ref[...] * cn_ref[...]


def edgeval_call(rows2, cols2, keep2, dpow2, tile_e, n_chunk):
    E_pad = rows2.shape[1]
    N_pad = dpow2.shape[1]
    grid = (E_pad // tile_e, N_pad // n_chunk)
    return pl.pallas_call(
        _edgeval_kernel,
        out_shape=jax.ShapeDtypeStruct((1, E_pad), jnp.float32),
        grid=grid,
        in_specs=[
            pl.BlockSpec((1, tile_e), lambda i, j: (0, i)),
            pl.BlockSpec((1, tile_e), lambda i, j: (0, i)),
            pl.BlockSpec((1, tile_e), lambda i, j: (0, i)),
            pl.BlockSpec((1, n_chunk), lambda i, j: (0, j)),
        ],
        out_specs=pl.BlockSpec((1, tile_e), lambda i, j: (0, i)),
        scratch_shapes=[
            pltpu.VMEM((1, tile_e), jnp.float32),
            pltpu.VMEM((1, tile_e), jnp.float32),
        ],
        compiler_params=pltpu.CompilerParams(
            dimension_semantics=("parallel", "arbitrary"),
            vmem_limit_bytes=_VMEM_LIMIT,
        ),
    )(rows2, cols2, keep2, dpow2)


# ----------------------------------------------------------------------------
# Wrapper: full RandomMaskSubgraphs.forward with fixed (padded) shapes.
# ----------------------------------------------------------------------------
@functools.partial(
    jax.jit,
    static_argnames=("num_nodes", "mask_depth", "path_prob",
                     "tile_e", "n_chunk", "n_split"))
def random_mask_subgraphs(rows, cols, seeds, num_nodes, mask_depth, path_prob,
                          key, tile_e=1024, n_chunk=1024, n_split=2):
    E = int(rows.shape[0])

    # lane-dense edge tile (multiple of 128; 256-multiples preferred for MXU)
    tile_e = _round_up(min(tile_e, _round_up(E, 128)), 128)
    # node-id chunk: multiple of 128 dividing N_pad
    n_chunk = _round_up(min(n_chunk, _round_up(num_nodes, 128)), 128)
    N_pad = _round_up(num_nodes, n_chunk)
    E_pad = _round_up(E, tile_e * n_split)

    # seed ids are elementwise sums rows+cols (reference semantics), up to
    # 2*(N-1); only ids < N can match an edge endpoint, so the kernels compare
    # against [0, N_pad) while the unique/subsample glue covers [0, M_pad).
    M_pad = max(_round_up(2 * num_nodes, 128), N_pad)

    pad = E_pad - E
    rows_p = jnp.concatenate([rows.astype(jnp.int32), jnp.zeros((pad,), jnp.int32)])
    cols_p = jnp.concatenate([cols.astype(jnp.int32), jnp.zeros((pad,), jnp.int32)])
    valid = jnp.concatenate([jnp.ones((E,), jnp.float32), jnp.zeros((pad,), jnp.float32)])

    rows2 = rows_p.reshape(1, E_pad)          # lane-dense edge row vectors
    cols2 = cols_p.reshape(1, E_pad)

    member_full = jnp.zeros((M_pad,), jnp.float32).at[seeds.astype(jnp.int32)].set(1.0)
    remaining = valid
    masked_depth = jnp.full((E_pad,), -1, jnp.int32)

    # TODO(synk): fusing all depths (incidence + seed subsample via pltpu.prng_*)
    # into one pallas_call would drop mask_depth-1 HBM round-trips of
    # remaining/idct; modest win, left for later.
    for i in range(mask_depth):
        idct = incidence_call(
            rows2, cols2, remaining.reshape(1, E_pad),
            member_full[:N_pad].reshape(1, N_pad), tile_e, n_chunk,
        ).reshape(E_pad)
        idct_b = idct > 0.0
        masked_depth = jnp.where(idct_b, jnp.int32(i), masked_depth)
        remaining = remaining * (1.0 - idct)

        if i != mask_depth - 1:
            # nxtSeeds = unique(nxtRows + nxtCols) (elementwise sum, per the
            # torch reference); keep floor(|unique| * path_prob**(i+1))
            # uniformly-random members.  Rank = one argsort + an iota scatter.
            # TODO(synk): torch crashes when nxtSeeds ends up empty at the next
            # depth; here an empty membership simply masks nothing further.
            sums = rows_p + cols_p                                  # (E_pad,)
            next_member = jnp.zeros((M_pad,), jnp.float32).at[sums].max(idct)
            n_unique = jnp.sum(next_member)
            k = jnp.floor(n_unique * (path_prob ** (i + 1))).astype(jnp.int32)
            key, sub = jax.random.split(key)
            rnd = jax.random.uniform(sub, (M_pad,))
            scores = jnp.where(next_member > 0.0, rnd, jnp.inf)
            order = jnp.argsort(scores)
            rank = jnp.zeros((M_pad,), jnp.int32).at[order].set(
                jnp.arange(M_pad, dtype=jnp.int32))
            member_full = jnp.where((next_member > 0.0) & (rank < k), 1.0, 0.0)

    # ---- symmetric normalization over remaining edges (two kernels) --------
    keep2 = remaining.reshape(1, E_pad)
    deg = degree_call(rows2, keep2, N_pad, tile_e, n_chunk, n_split)  # (1,N_pad)
    # row-degree only, exactly like torch.sparse.sum(adj, dim=1) in the ref.
    dpow = jnp.power(deg + 1e-12, -0.5)                               # (1,N_pad)
    vals = edgeval_call(rows2, cols2, keep2, dpow, tile_e, n_chunk).reshape(E_pad)

    # ---- single-argsort compaction for both outputs -------------------------
    # group 0: kept (encoder) edges, 1..mask_depth: masked at depth-1,
    # mask_depth+1: padding.  int32 keys OK while E_pad*(mask_depth+2) < 2**31.
    rem_b = remaining > 0.0
    masked_b = masked_depth >= 0
    group = jnp.where(rem_b, 0,
                      jnp.where(masked_b, masked_depth + 1, mask_depth + 1))
    idx = jnp.arange(E_pad, dtype=jnp.int32)
    order = jnp.argsort(group.astype(jnp.int32) * jnp.int32(E_pad) + idx)
    g_s = group[order]
    r_s = rows_p[order]
    c_s = cols_p[order]
    v_s = vals[order]

    # encoder adjacency: remaining edges first, original order; padding -1 / 0.
    enc_rows = jnp.where(g_s == 0, r_s, -1)
    enc_cols = jnp.where(g_s == 0, c_s, -1)
    enc_vals = jnp.where(g_s == 0, v_s, 0.0)

    # masked_edge ordered by (depth, original edge index); padding (-1, -1).
    n_keep = jnp.sum(rem_b.astype(jnp.int32))
    shift_idx = (idx + n_keep) % jnp.int32(E_pad)   # rotate kept edges to back
    g_m = g_s[shift_idx]
    r_m = r_s[shift_idx]
    c_m = c_s[shift_idx]
    is_masked = (g_m >= 1) & (g_m <= mask_depth)
    m_rows = jnp.where(is_masked, r_m, -1)
    m_cols = jnp.where(is_masked, c_m, -1)
    masked_edge = jnp.stack([m_rows, m_cols], axis=1)

    return enc_rows, enc_cols, enc_vals, masked_edge, remaining, masked_depth


# ----------------------------------------------------------------------------
if __name__ == "__main__":
    class Cfg:
        mask_depth = 2
        path_prob = 0.5

    key = jax.random.PRNGKey(0)
    k1, k2, k3 = jax.random.split(key, 3)

    N = 16                 # nodes
    E_half = 20            # undirected edges (duplicated both directions)
    r_half = jax.random.randint(k1, (E_half,), 0, N, dtype=jnp.int32)
    c_half = jax.random.randint(k2, (E_half,), 0, N, dtype=jnp.int32)
    rows = jnp.concatenate([r_half, c_half])     # symmetric edge list, E = 40
    cols = jnp.concatenate([c_half, r_half])
    seeds = jnp.array([0, 3, 7], dtype=jnp.int32)

    outs = random_mask_subgraphs(
        rows, cols, seeds,
        num_nodes=N, mask_depth=Cfg.mask_depth, path_prob=Cfg.path_prob, key=k3)
    enc_rows, enc_cols, enc_vals, masked_edge, remaining, masked_depth = outs
    jax.block_until_ready(outs)

    # ---- lightweight numpy cross-check of the kernels -----------------------
    E = int(rows.shape[0])
    r_np = np.asarray(rows)
    c_np = np.asarray(cols)
    rem_np = np.asarray(remaining)[:E] > 0
    md_np = np.asarray(masked_depth)[:E]

    # every real edge is either kept or masked, never both
    assert np.all(rem_np ^ (md_np >= 0))

    # normalization: deg from rows only (matches torch.sparse.sum(adj, dim=1))
    deg_ref = np.zeros(N, dtype=np.float64)
    for e in range(E):
        if rem_np[e]:
            deg_ref[r_np[e]] += 1.0
    dpow_ref = (deg_ref + 1e-12) ** -0.5

    er = np.asarray(enc_rows)
    ec = np.asarray(enc_cols)
    ev = np.asarray(enc_vals)
    got, ref = [], []
    for j in range(er.shape[0]):
        if er[j] >= 0:
            got.append(float(ev[j]))
            ref.append(dpow_ref[er[j]] * dpow_ref[ec[j]])
    assert len(got) == int(rem_np.sum())
    np.testing.assert_allclose(np.array(got), np.array(ref), rtol=5e-4, atol=1e-6)

    # edges masked at depth 0 must be incident to an initial seed
    seeds_np = set(int(s) for s in np.asarray(seeds))
    for e in range(E):
        if md_np[e] == 0:
            assert (int(r_np[e]) in seeds_np) or (int(c_np[e]) in seeds_np)

    # masked_edge holds exactly the masked edges at its front
    me = np.asarray(masked_edge)
    assert int((me[:, 0] >= 0).sum()) == int((md_np >= 0).sum())

    print("KERNEL_OK")
</pallas_src>

<mosaic_0001>
module attributes {stable_mosaic.version = 11 : i64} {
  func.func private @main(%arg0: i32) attributes {dimension_semantics = [#tpu.dimension_semantics<core_parallel>], iteration_bounds = array<i64: 2>, tpu.core_type = #tpu.core_type<sc_scalar_subcore>, window_params = []} {
    return
  }
}

module attributes {stable_mosaic.version = 11 : i64} {
  func.func private @main(%arg0: i32) attributes {dimension_semantics = [#tpu.dimension_semantics<core_parallel>], iteration_bounds = array<i64: 2>, tpu.core_type = #tpu.core_type<sc_scalar_subcore>, window_params = []} {
    return
  }
}

module attributes {stable_mosaic.version = 11 : i64} {
  func.func @_incidence_kernel(%arg0: i32, %arg1: i32, %arg2: memref<1x128xi32, #tpu.memory_space<vmem>>, %arg3: memref<1x128xi32, #tpu.memory_space<vmem>>, %arg4: memref<1x128xf32, #tpu.memory_space<vmem>>, %arg5: memref<1x128xf32, #tpu.memory_space<vmem>>, %arg6: memref<1x128xf32, #tpu.memory_space<vmem>>) attributes {dimension_semantics = [#tpu.dimension_semantics<parallel>, #tpu.dimension_semantics<arbitrary>], iteration_bounds = array<i64: 2, 1>, scalar_prefetch = 0 : i64, scratch_operands = 0 : i64, tpu.core_type = #tpu.core_type<tc>, window_params = [{transform_indices = @transform_0, window_bounds = array<i64: 1, 128>}, {transform_indices = @transform_1, window_bounds = array<i64: 1, 128>}, {transform_indices = @transform_2, window_bounds = array<i64: 1, 128>}, {transform_indices = @transform_3, window_bounds = array<i64: 1, 128>}, {transform_indices = @transform_4, window_bounds = array<i64: 1, 128>}]} {
    %c0_i32 = arith.constant 0 : i32
    %0 = arith.cmpi eq, %arg1, %c0_i32 : i32
    %1 = arith.extui %0 : i1 to i32
    %c0_i32_0 = arith.constant 0 : i32
    %2 = arith.cmpi ne, %1, %c0_i32_0 : i32
    scf.if %2 {
      %cst_14 = arith.constant 0.000000e+00 : f32
      %29 = vector.broadcast %cst_14 : f32 to vector<1x128xf32>
      %c0_15 = arith.constant 0 : index
      %c0_16 = arith.constant 0 : index
      %30 = vector.load %arg6[%c0_15, %c0_16] : memref<1x128xf32, #tpu.memory_space<vmem>>, vector<1x128xf32>
      tpu.vector_store %arg6[%c0_15, %c0_16], %29 {strides = array<i32>} : memref<1x128xf32, #tpu.memory_space<vmem>>, vector<1x128xf32>,
    } else {
    }
    %c0 = arith.constant 0 : index
    %c0_1 = arith.constant 0 : index
    %3 = vector.load %arg2[%c0, %c0_1] : memref<1x128xi32, #tpu.memory_space<vmem>>, vector<1x128xi32>
    %c0_2 = arith.constant 0 : index
    %c0_3 = arith.constant 0 : index
    %4 = vector.load %arg3[%c0_2, %c0_3] : memref<1x128xi32, #tpu.memory_space<vmem>>, vector<1x128xi32>
    %c128_i32 = arith.constant 128 : i32
    %5 = arith.muli %arg1, %c128_i32 : i32
    %6 = tpu.iota {dimensions = array<i32: 0>} : vector<128x1xi32>
    %7 = vector.broadcast %5 : i32 to vector<128x1xi32>
    %8 = arith.addi %7, %6 : vector<128x1xi32>
    %9 = vector.broadcast %3 : vector<1x128xi32> to vector<128x128xi32>
    %10 = vector.broadcast %8 : vector<128x1xi32> to vector<128x128xi32>
    %11 = arith.cmpi eq, %9, %10 : vector<128x128xi32>
    %12 = vector.broadcast %4 : vector<1x128xi32> to vector<128x128xi32>
    %13 = vector.broadcast %8 : vector<128x1xi32> to vector<128x128xi32>
    %14 = arith.cmpi eq, %12, %13 : vector<128x128xi32>
    %15 = arith.ori %11, %14 : vector<128x128xi1>
    %cst = arith.constant 1.000000e+00 : f32
    %cst_4 = arith.constant 0.000000e+00 : f32
    %16 = vector.broadcast %cst : f32 to vector<128x128xf32>
    %17 = vector.broadcast %cst_4 : f32 to vector<128x128xf32>
    %18 = arith.select %15, %16, %17 : vector<128x128xi1>, vector<128x128xf32>
    %19 = arith.truncf %18 : vector<128x128xf32> to vector<128x128xbf16>
    %c0_5 = arith.constant 0 : index
    %c0_6 = arith.constant 0 : index
    %20 = vector.load %arg5[%c0_5, %c0_6] : memref<1x128xf32, #tpu.memory_space<vmem>>, vector<1x128xf32>
    %21 = arith.truncf %20 : vector<1x128xf32> to vector<1x128xbf16>
    %c0_7 = arith.constant 0 : index
    %c0_8 = arith.constant 0 : index
    %22 = vector.load %arg6[%c0_7, %c0_8] : memref<1x128xf32, #tpu.memory_space<vmem>>, vector<1x128xf32>
    %cst_9 = arith.constant dense<0.000000e+00> : vector<1x128xf32>
    %23 = tpu.matmul %21, %19, %cst_9 {dimension_numbers = #tpu.dot_dimension_numbers<[1], [0], [0], [1], [0, 0, 1, 1], [], []>} : vector<1x128xbf16>, vector<128x128xbf16>, vector<1x128xf32> -> vector<1x128xf32>
    %24 = arith.addf %22, %23 : vector<1x128xf32>
    %c0_10 = arith.constant 0 : index
    %c0_11 = arith.constant 0 : index
    %25 = vector.load %arg6[%c0_10, %c0_11] : memref<1x128xf32, #tpu.memory_space<vmem>>, vector<1x128xf32>
    tpu.vector_store %arg6[%c0_10, %c0_11], %24 {strides = array<i32>} : memref<1x128xf32, #tpu.memory_space<vmem>>, vector<1x128xf32>,
    %c0_i32_12 = arith.constant 0 : i32
    %26 = arith.cmpi eq, %arg1, %c0_i32_12 : i32
    %27 = arith.extui %26 : i1 to i32
    %c0_i32_13 = arith.constant 0 : i32
    %28 = arith.cmpi ne, %27, %c0_i32_13 : i32
    scf.if %28 {
      %c0_14 = arith.constant 0 : index
      %c0_15 = arith.constant 0 : index
      %29 = vector.load %arg4[%c0_14, %c0_15] : memref<1x128xf32, #tpu.memory_space<vmem>>, vector<1x128xf32>
      %cst_16 = arith.constant 0.000000e+00 : f32
      %30 = vector.broadcast %cst_16 : f32 to vector<1x128xf32>
      %31 = arith.cmpf ogt, %29, %30 : vector<1x128xf32>
      %c0_17 = arith.constant 0 : index
      %c0_18 = arith.constant 0 : index
      %32 = vector.load %arg6[%c0_17, %c0_18] : memref<1x128xf32, #tpu.memory_space<vmem>>, vector<1x128xf32>
      %cst_19 = arith.constant 0.000000e+00 : f32
      %33 = vector.broadcast %cst_19 : f32 to vector<1x128xf32>
      %34 = arith.cmpf ogt, %32, %33 : vector<1x128xf32>
      %35 = arith.andi %31, %34 : vector<1x128xi1>
      %cst_20 = arith.constant 1.000000e+00 : f32
      %cst_21 = arith.constant 0.000000e+00 : f32
      %36 = vector.broadcast %cst_20 : f32 to vector<1x128xf32>
      %37 = vector.broadcast %cst_21 : f32 to vector<1x128xf32>
      %38 = arith.select %35, %36, %37 : vector<1x128xi1>, vector<1x128xf32>
      %c0_22 = arith.constant 0 : index
      %c0_23 = arith.constant 0 : index
      %39 = vector.load %arg6[%c0_22, %c0_23] : memref<1x128xf32, #tpu.memory_space<vmem>>, vector<1x128xf32>
      tpu.vector_store %arg6[%c0_22, %c0_23], %38 {strides = array<i32>} : memref<1x128xf32, #tpu.memory_space<vmem>>, vector<1x128xf32>,
    } else {
    }
    return
  }
  func.func @transform_0(%arg0: i32, %arg1: i32) -> (i32, i32) {
    %c0_i32 = arith.constant 0 : i32
    %c0_i32_0 = arith.constant 0 : i32
    return %c0_i32, %arg0 : i32, i32
  }
  func.func @transform_1(%arg0: i32, %arg1: i32) -> (i32, i32) {
    %c0_i32 = arith.constant 0 : i32
    %c0_i32_0 = arith.constant 0 : i32
    return %c0_i32, %arg0 : i32, i32
  }
  func.func @transform_2(%arg0: i32, %arg1: i32) -> (i32, i32) {
    %c0_i32 = arith.constant 0 : i32
    %c0_i32_0 = arith.constant 0 : i32
    return %c0_i32, %arg0 : i32, i32
  }
  func.func @transform_3(%arg0: i32, %arg1: i32) -> (i32, i32) {
    %c0_i32 = arith.constant 0 : i32
    %c0_i32_0 = arith.constant 0 : i32
    return %c0_i32, %arg1 : i32, i32
  }
  func.func @transform_4(%arg0: i32, %arg1: i32) -> (i32, i32) {
    %c0_i32 = arith.constant 0 : i32
    %c0_i32_0 = arith.constant 0 : i32
    return %c0_i32, %arg0 : i32, i32
  }
}

module attributes {stable_mosaic.version = 11 : i64} {
  func.func @_incidence_kernel(%arg0: i32, %arg1: i32, %arg2: memref<1x128xi32, #tpu.memory_space<vmem>>, %arg3: memref<1x128xi32, #tpu.memory_space<vmem>>, %arg4: memref<1x128xf32, #tpu.memory_space<vmem>>, %arg5: memref<1x128xf32, #tpu.memory_space<vmem>>, %arg6: memref<1x128xf32, #tpu.memory_space<vmem>>) attributes {dimension_semantics = [#tpu.dimension_semantics<parallel>, #tpu.dimension_semantics<arbitrary>], iteration_bounds = array<i64: 2, 1>, scalar_prefetch = 0 : i64, scratch_operands = 0 : i64, tpu.core_type = #tpu.core_type<tc>, window_params = [{transform_indices = @transform_0, window_bounds = array<i64: 1, 128>}, {transform_indices = @transform_1, window_bounds = array<i64: 1, 128>}, {transform_indices = @transform_2, window_bounds = array<i64: 1, 128>}, {transform_indices = @transform_3, window_bounds = array<i64: 1, 128>}, {transform_indices = @transform_4, window_bounds = array<i64: 1, 128>}]} {
    %c0_i32 = arith.constant 0 : i32
    %0 = arith.cmpi eq, %arg1, %c0_i32 : i32
    %1 = arith.extui %0 : i1 to i32
    %c0_i32_0 = arith.constant 0 : i32
    %2 = arith.cmpi ne, %1, %c0_i32_0 : i32
    scf.if %2 {
      %cst_14 = arith.constant 0.000000e+00 : f32
      %30 = vector.broadcast %cst_14 : f32 to vector<1x128xf32>
      %c0_15 = arith.constant 0 : index
      %c0_16 = arith.constant 0 : index
      %31 = vector.load %arg6[%c0_15, %c0_16] : memref<1x128xf32, #tpu.memory_space<vmem>>, vector<1x128xf32>
      tpu.vector_store %arg6[%c0_15, %c0_16], %30 {strides = array<i32>} : memref<1x128xf32, #tpu.memory_space<vmem>>, vector<1x128xf32>,
    } else {
    }
    %c0 = arith.constant 0 : index
    %c0_1 = arith.constant 0 : index
    %3 = vector.load %arg2[%c0, %c0_1] : memref<1x128xi32, #tpu.memory_space<vmem>>, vector<1x128xi32>
    %c0_2 = arith.constant 0 : index
    %c0_3 = arith.constant 0 : index
    %4 = vector.load %arg3[%c0_2, %c0_3] : memref<1x128xi32, #tpu.memory_space<vmem>>, vector<1x128xi32>
    %c128_i32 = arith.constant 128 : i32
    %5 = arith.muli %arg1, %c128_i32 : i32
    %6 = tpu.iota {dimensions = array<i32: 0>} : vector<128x1xi32>
    %7 = vector.broadcast %5 : i32 to vector<128x1xi32>
    %8 = arith.addi %7, %6 : vector<128x1xi32>
    %9 = vector.broadcast %3 : vector<1x128xi32> to vector<128x128xi32>
    %10 = vector.broadcast %8 : vector<128x1xi32> to vector<128x128xi32>
    %11 = arith.cmpi eq, %9, %10 : vector<128x128xi32>
    %12 = vector.broadcast %4 : vector<1x128xi32> to vector<128x128xi32>
    %13 = vector.broadcast %8 : vector<128x1xi32> to vector<128x128xi32>
    %14 = arith.cmpi eq, %12, %13 : vector<128x128xi32>
    %15 = arith.ori %11, %14 : vector<128x128xi1>
    %cst = arith.constant 1.000000e+00 : f32
    %cst_4 = arith.constant 0.000000e+00 : f32
    %16 = vector.broadcast %cst : f32 to vector<128x128xf32>
    %17 = vector.broadcast %cst_4 : f32 to vector<128x128xf32>
    %18 = arith.select %15, %16, %17 : vector<128x128xi1>, vector<128x128xf32>
    %19 = arith.truncf %18 : vector<128x128xf32> to vector<128x128xbf16>
    %c0_5 = arith.constant 0 : index
    %c0_6 = arith.constant 0 : index
    %20 = vector.load %arg5[%c0_5, %c0_6] : memref<1x128xf32, #tpu.memory_space<vmem>>, vector<1x128xf32>
    %21 = vector.shape_cast %20 : vector<1x128xf32> to vector<1x128xf32>
    %22 = arith.truncf %21 : vector<1x128xf32> to vector<1x128xbf16>
    %c0_7 = arith.constant 0 : index
    %c0_8 = arith.constant 0 : index
    %23 = vector.load %arg6[%c0_7, %c0_8] : memref<1x128xf32, #tpu.memory_space<vmem>>, vector<1x128xf32>
    %cst_9 = arith.constant dense<0.000000e+00> : vector<1x128xf32>
    %24 = tpu.matmul %22, %19, %cst_9 {dimension_numbers = #tpu.dot_dimension_numbers<[1], [0], [0], [1], [0, 0, 1, 1], [], []>} : vector<1x128xbf16>, vector<128x128xbf16>, vector<1x128xf32> -> vector<1x128xf32>
    %25 = arith.addf %23, %24 : vector<1x128xf32>
    %c0_10 = arith.constant 0 : index
    %c0_11 = arith.constant 0 : index
    %26 = vector.load %arg6[%c0_10, %c0_11] : memref<1x128xf32, #tpu.memory_space<vmem>>, vector<1x128xf32>
    tpu.vector_store %arg6[%c0_10, %c0_11], %25 {strides = array<i32>} : memref<1x128xf32, #tpu.memory_space<vmem>>, vector<1x128xf32>,
    %c0_i32_12 = arith.constant 0 : i32
    %27 = arith.cmpi eq, %arg1, %c0_i32_12 : i32
    %28 = arith.extui %27 : i1 to i32
    %c0_i32_13 = arith.constant 0 : i32
    %29 = arith.cmpi ne, %28, %c0_i32_13 : i32
    scf.if %29 {
      %c0_14 = arith.constant 0 : index
      %c0_15 = arith.constant 0 : index
      %30 = vector.load %arg4[%c0_14, %c0_15] : memref<1x128xf32, #tpu.memory_space<vmem>>, vector<1x128xf32>
      %cst_16 = arith.constant 0.000000e+00 : f32
      %31 = vector.broadcast %cst_16 : f32 to vector<1x128xf32>
      %32 = arith.cmpf ogt, %30, %31 : vector<1x128xf32>
      %c0_17 = arith.constant 0 : index
      %c0_18 = arith.constant 0 : index
      %33 = vector.load %arg6[%c0_17, %c0_18] : memref<1x128xf32, #tpu.memory_space<vmem>>, vector<1x128xf32>
      %cst_19 = arith.constant 0.000000e+00 : f32
      %34 = vector.broadcast %cst_19 : f32 to vector<1x128xf32>
      %35 = arith.cmpf ogt, %33, %34 : vector<1x128xf32>
      %36 = arith.andi %32, %35 : vector<1x128xi1>
      %cst_20 = arith.constant 1.000000e+00 : f32
      %cst_21 = arith.constant 0.000000e+00 : f32
      %37 = vector.broadcast %cst_20 : f32 to vector<1x128xf32>
      %38 = vector.broadcast %cst_21 : f32 to vector<1x128xf32>
      %39 = arith.select %36, %37, %38 : vector<1x128xi1>, vector<1x128xf32>
      %c0_22 = arith.constant 0 : index
      %c0_23 = arith.constant 0 : index
      %40 = vector.load %arg6[%c0_22, %c0_23] : memref<1x128xf32, #tpu.memory_space<vmem>>, vector<1x128xf32>
      tpu.vector_store %arg6[%c0_22, %c0_23], %39 {strides = array<i32>} : memref<1x128xf32, #tpu.memory_space<vmem>>, vector<1x128xf32>,
    } else {
    }
    return
  }
  func.func @transform_0(%arg0: i32, %arg1: i32) -> (i32, i32) {
    %c0_i32 = arith.constant 0 : i32
    %c0_i32_0 = arith.constant 0 : i32
    return %c0_i32, %arg0 : i32, i32
  }
  func.func @transform_1(%arg0: i32, %arg1: i32) -> (i32, i32) {
    %c0_i32 = arith.constant 0 : i32
    %c0_i32_0 = arith.constant 0 : i32
    return %c0_i32, %arg0 : i32, i32
  }
  func.func @transform_2(%arg0: i32, %arg1: i32) -> (i32, i32) {
    %c0_i32 = arith.constant 0 : i32
    %c0_i32_0 = arith.constant 0 : i32
    return %c0_i32, %arg0 : i32, i32
  }
  func.func @transform_3(%arg0: i32, %arg1: i32) -> (i32, i32) {
    %c0_i32 = arith.constant 0 : i32
    %c0_i32_0 = arith.constant 0 : i32
    return %c0_i32, %arg1 : i32, i32
  }
  func.func @transform_4(%arg0: i32, %arg1: i32) -> (i32, i32) {
    %c0_i32 = arith.constant 0 : i32
    %c0_i32_0 = arith.constant 0 : i32
    return %c0_i32, %arg0 : i32, i32
  }
}

module attributes {stable_mosaic.version = 11 : i64} {
  func.func @_degree_kernel(%arg0: i32, %arg1: i32, %arg2: i32, %arg3: memref<1x128xi32, #tpu.memory_space<vmem>>, %arg4: memref<1x128xf32, #tpu.memory_space<vmem>>, %arg5: memref<1x1x128xf32, #tpu.memory_space<vmem>>) attributes {dimension_semantics = [#tpu.dimension_semantics<parallel>, #tpu.dimension_semantics<parallel>, #tpu.dimension_semantics<arbitrary>], iteration_bounds = array<i64: 2, 1, 1>, scalar_prefetch = 0 : i64, scratch_operands = 0 : i64, tpu.core_type = #tpu.core_type<tc>, window_params = [{transform_indices = @transform_0, window_bounds = array<i64: 1, 128>}, {transform_indices = @transform_1, window_bounds = array<i64: 1, 128>}, {transform_indices = @transform_2, window_bounds = array<i64: 1, 1, 128>}]} {
    %c0_i32 = arith.constant 0 : i32
    %0 = arith.cmpi eq, %arg2, %c0_i32 : i32
    %1 = arith.extui %0 : i1 to i32
    %c0_i32_0 = arith.constant 0 : i32
    %2 = arith.cmpi ne, %1, %c0_i32_0 : i32
    scf.if %2 {
      %cst_12 = arith.constant 0.000000e+00 : f32
      %22 = vector.broadcast %cst_12 : f32 to vector<1x1x128xf32>
      %c0_13 = arith.constant 0 : index
      %c0_14 = arith.constant 0 : index
      %c0_15 = arith.constant 0 : index
      %23 = vector.load %arg5[%c0_13, %c0_14, %c0_15] : memref<1x1x128xf32, #tpu.memory_space<vmem>>, vector<1x1x128xf32>
      tpu.vector_store %arg5[%c0_13, %c0_14, %c0_15], %22 {strides = array<i32>} : memref<1x1x128xf32, #tpu.memory_space<vmem>>, vector<1x1x128xf32>,
    } else {
    }
    %c128_i32 = arith.constant 128 : i32
    %3 = arith.muli %arg1, %c128_i32 : i32
    %4 = tpu.iota {dimensions = array<i32: 0>} : vector<128x1xi32>
    %5 = vector.broadcast %3 : i32 to vector<128x1xi32>
    %6 = arith.addi %5, %4 : vector<128x1xi32>
    %c0 = arith.constant 0 : index
    %c0_1 = arith.constant 0 : index
    %7 = vector.load %arg3[%c0, %c0_1] : memref<1x128xi32, #tpu.memory_space<vmem>>, vector<1x128xi32>
    %8 = vector.broadcast %7 : vector<1x128xi32> to vector<128x128xi32>
    %9 = vector.broadcast %6 : vector<128x1xi32> to vector<128x128xi32>
    %10 = arith.cmpi eq, %8, %9 : vector<128x128xi32>
    %cst = arith.constant 1.000000e+00 : f32
    %cst_2 = arith.constant 0.000000e+00 : f32
    %11 = vector.broadcast %cst : f32 to vector<128x128xf32>
    %12 = vector.broadcast %cst_2 : f32 to vector<128x128xf32>
    %13 = arith.select %10, %11, %12 : vector<128x128xi1>, vector<128x128xf32>
    %14 = arith.truncf %13 : vector<128x128xf32> to vector<128x128xbf16>
    %c0_3 = arith.constant 0 : index
    %c0_4 = arith.constant 0 : index
    %15 = vector.load %arg4[%c0_3, %c0_4] : memref<1x128xf32, #tpu.memory_space<vmem>>, vector<1x128xf32>
    %16 = arith.truncf %15 : vector<1x128xf32> to vector<1x128xbf16>
    %cst_5 = arith.constant dense<0.000000e+00> : vector<1x128xf32>
    %17 = tpu.matmul %16, %14, %cst_5 {dimension_numbers = #tpu.dot_dimension_numbers<[1], [1], [0], [0], [0, 0, 1, 0], [], []>} : vector<1x128xbf16>, vector<128x128xbf16>, vector<1x128xf32> -> vector<1x128xf32>
    %c0_6 = arith.constant 0 : index
    %c0_7 = arith.constant 0 : index
    %c0_8 = arith.constant 0 : index
    %18 = vector.load %arg5[%c0_6, %c0_7, %c0_8] : memref<1x1x128xf32, #tpu.memory_space<vmem>>, vector<1x1x128xf32>
    %19 = vector.shape_cast %17 : vector<1x128xf32> to vector<1x1x128xf32>
    %20 = arith.addf %18, %19 : vector<1x1x128xf32>
    %c0_9 = arith.constant 0 : index
    %c0_10 = arith.constant 0 : index
    %c0_11 = arith.constant 0 : index
    %21 = vector.load %arg5[%c0_9, %c0_10, %c0_11] : memref<1x1x128xf32, #tpu.memory_space<vmem>>, vector<1x1x128xf32>
    tpu.vector_store %arg5[%c0_9, %c0_10, %c0_11], %20 {strides = array<i32>} : memref<1x1x128xf32, #tpu.memory_space<vmem>>, vector<1x1x128xf32>,
    return
  }
  func.func @transform_0(%arg0: i32, %arg1: i32, %arg2: i32) -> (i32, i32) {
    %c1_i32 = arith.constant 1 : i32
    %0 = arith.muli %arg0, %c1_i32 : i32
    %1 = arith.addi %0, %arg2 : i32
    %c0_i32 = arith.constant 0 : i32
    %c0_i32_0 = arith.constant 0 : i32
    return %c0_i32, %1 : i32, i32
  }
  func.func @transform_1(%arg0: i32, %arg1: i32, %arg2: i32) -> (i32, i32) {
    %c1_i32 = arith.constant 1 : i32
    %0 = arith.muli %arg0, %c1_i32 : i32
    %1 = arith.addi %0, %arg2 : i32
    %c0_i32 = arith.constant 0 : i32
    %c0_i32_0 = arith.constant 0 : i32
    return %c0_i32, %1 : i32, i32
  }
  func.func @transform_2(%arg0: i32, %arg1: i32, %arg2: i32) -> (i32, i32, i32) {
    %c0_i32 = arith.constant 0 : i32
    %c0_i32_0 = arith.constant 0 : i32
    return %arg0, %c0_i32, %arg1 : i32, i32, i32
  }
}

module attributes {stable_mosaic.version = 11 : i64} {
  func.func @_edgeval_kernel(%arg0: i32, %arg1: i32, %arg2: memref<1x128xi32, #tpu.memory_space<vmem>>, %arg3: memref<1x128xi32, #tpu.memory_space<vmem>>, %arg4: memref<1x128xf32, #tpu.memory_space<vmem>>, %arg5: memref<1x128xf32, #tpu.memory_space<vmem>>, %arg6: memref<1x128xf32, #tpu.memory_space<vmem>>, %arg7: memref<1x128xf32, #tpu.memory_space<vmem>>, %arg8: memref<1x128xf32, #tpu.memory_space<vmem>>) attributes {dimension_semantics = [#tpu.dimension_semantics<parallel>, #tpu.dimension_semantics<arbitrary>], iteration_bounds = array<i64: 2, 1>, scalar_prefetch = 0 : i64, scratch_operands = 2 : i64, tpu.core_type = #tpu.core_type<tc>, window_params = [{transform_indices = @transform_0, window_bounds = array<i64: 1, 128>}, {transform_indices = @transform_1, window_bounds = array<i64: 1, 128>}, {transform_indices = @transform_2, window_bounds = array<i64: 1, 128>}, {transform_indices = @transform_3, window_bounds = array<i64: 1, 128>}, {transform_indices = @transform_4, window_bounds = array<i64: 1, 128>}]} {
    %c0_i32 = arith.constant 0 : i32
    %0 = arith.cmpi eq, %arg1, %c0_i32 : i32
    %1 = arith.extui %0 : i1 to i32
    %c0_i32_0 = arith.constant 0 : i32
    %2 = arith.cmpi ne, %1, %c0_i32_0 : i32
    scf.if %2 {
      %cst_23 = arith.constant 0.000000e+00 : f32
      %43 = vector.broadcast %cst_23 : f32 to vector<1x128xf32>
      %c0_24 = arith.constant 0 : index
      %c0_25 = arith.constant 0 : index
      %44 = vector.load %arg7[%c0_24, %c0_25] : memref<1x128xf32, #tpu.memory_space<vmem>>, vector<1x128xf32>
      tpu.vector_store %arg7[%c0_24, %c0_25], %43 {strides = array<i32>} : memref<1x128xf32, #tpu.memory_space<vmem>>, vector<1x128xf32>,
      %cst_26 = arith.constant 0.000000e+00 : f32
      %45 = vector.broadcast %cst_26 : f32 to vector<1x128xf32>
      %c0_27 = arith.constant 0 : index
      %c0_28 = arith.constant 0 : index
      %46 = vector.load %arg8[%c0_27, %c0_28] : memref<1x128xf32, #tpu.memory_space<vmem>>, vector<1x128xf32>
      tpu.vector_store %arg8[%c0_27, %c0_28], %45 {strides = array<i32>} : memref<1x128xf32, #tpu.memory_space<vmem>>, vector<1x128xf32>,
    } else {
    }
    %c128_i32 = arith.constant 128 : i32
    %3 = arith.muli %arg1, %c128_i32 : i32
    %4 = tpu.iota {dimensions = array<i32: 0>} : vector<128x1xi32>
    %5 = vector.broadcast %3 : i32 to vector<128x1xi32>
    %6 = arith.addi %5, %4 : vector<128x1xi32>
    %c0 = arith.constant 0 : index
    %c0_1 = arith.constant 0 : index
    %7 = vector.load %arg2[%c0, %c0_1] : memref<1x128xi32, #tpu.memory_space<vmem>>, vector<1x128xi32>
    %c0_2 = arith.constant 0 : index
    %c0_3 = arith.constant 0 : index
    %8 = vector.load %arg3[%c0_2, %c0_3] : memref<1x128xi32, #tpu.memory_space<vmem>>, vector<1x128xi32>
    %c0_4 = arith.constant 0 : index
    %c0_5 = arith.constant 0 : index
    %9 = vector.load %arg5[%c0_4, %c0_5] : memref<1x128xf32, #tpu.memory_space<vmem>>, vector<1x128xf32>
    %10 = arith.truncf %9 : vector<1x128xf32> to vector<1x128xbf16>
    %11 = arith.extf %10 : vector<1x128xbf16> to vector<1x128xf32>
    %12 = arith.subf %9, %11 : vector<1x128xf32>
    %13 = arith.truncf %12 : vector<1x128xf32> to vector<1x128xbf16>
    %14 = vector.broadcast %7 : vector<1x128xi32> to vector<128x128xi32>
    %15 = vector.broadcast %6 : vector<128x1xi32> to vector<128x128xi32>
    %16 = arith.cmpi eq, %14, %15 : vector<128x128xi32>
    %cst = arith.constant 1.000000e+00 : f32
    %cst_6 = arith.constant 0.000000e+00 : f32
    %17 = vector.broadcast %cst : f32 to vector<128x128xf32>
    %18 = vector.broadcast %cst_6 : f32 to vector<128x128xf32>
    %19 = arith.select %16, %17, %18 : vector<128x128xi1>, vector<128x128xf32>
    %20 = arith.truncf %19 : vector<128x128xf32> to vector<128x128xbf16>
    %21 = vector.broadcast %8 : vector<1x128xi32> to vector<128x128xi32>
    %22 = vector.broadcast %6 : vector<128x1xi32> to vector<128x128xi32>
    %23 = arith.cmpi eq, %21, %22 : vector<128x128xi32>
    %cst_7 = arith.constant 1.000000e+00 : f32
    %cst_8 = arith.constant 0.000000e+00 : f32
    %24 = vector.broadcast %cst_7 : f32 to vector<128x128xf32>
    %25 = vector.broadcast %cst_8 : f32 to vector<128x128xf32>
    %26 = arith.select %23, %24, %25 : vector<128x128xi1>, vector<128x128xf32>
    %27 = arith.truncf %26 : vector<128x128xf32> to vector<128x128xbf16>
    %c0_9 = arith.constant 0 : index
    %c0_10 = arith.constant 0 : index
    %28 = vector.load %arg7[%c0_9, %c0_10] : memref<1x128xf32, #tpu.memory_space<vmem>>, vector<1x128xf32>
    %cst_11 = arith.constant dense<0.000000e+00> : vector<1x128xf32>
    %29 = tpu.matmul %10, %20, %cst_11 {dimension_numbers = #tpu.dot_dimension_numbers<[1], [0], [0], [1], [0, 0, 1, 1], [], []>} : vector<1x128xbf16>, vector<128x128xbf16>, vector<1x128xf32> -> vector<1x128xf32>
    %cst_12 = arith.constant dense<0.000000e+00> : vector<1x128xf32>
    %30 = tpu.matmul %13, %20, %cst_12 {dimension_numbers = #tpu.dot_dimension_numbers<[1], [0], [0], [1], [0, 0, 1, 1], [], []>} : vector<1x128xbf16>, vector<128x128xbf16>, vector<1x128xf32> -> vector<1x128xf32>
    %31 = arith.addf %29, %30 : vector<1x128xf32>
    %32 = arith.addf %28, %31 : vector<1x128xf32>
    %c0_13 = arith.constant 0 : index
    %c0_14 = arith.constant 0 : index
    %33 = vector.load %arg7[%c0_13, %c0_14] : memref<1x128xf32, #tpu.memory_space<vmem>>, vector<1x128xf32>
    tpu.vector_store %arg7[%c0_13, %c0_14], %32 {strides = array<i32>} : memref<1x128xf32, #tpu.memory_space<vmem>>, vector<1x128xf32>,
    %c0_15 = arith.constant 0 : index
    %c0_16 = arith.constant 0 : index
    %34 = vector.load %arg8[%c0_15, %c0_16] : memref<1x128xf32, #tpu.memory_space<vmem>>, vector<1x128xf32>
    %cst_17 = arith.constant dense<0.000000e+00> : vector<1x128xf32>
    %35 = tpu.matmul %10, %27, %cst_17 {dimension_numbers = #tpu.dot_dimension_numbers<[1], [0], [0], [1], [0, 0, 1, 1], [], []>} : vector<1x128xbf16>, vector<128x128xbf16>, vector<1x128xf32> -> vector<1x128xf32>
    %cst_18 = arith.constant dense<0.000000e+00> : vector<1x128xf32>
    %36 = tpu.matmul %13, %27, %cst_18 {dimension_numbers = #tpu.dot_dimension_numbers<[1], [0], [0], [1], [0, 0, 1, 1], [], []>} : vector<1x128xbf16>, vector<128x128xbf16>, vector<1x128xf32> -> vector<1x128xf32>
    %37 = arith.addf %35, %36 : vector<1x128xf32>
    %38 = arith.addf %34, %37 : vector<1x128xf32>
    %c0_19 = arith.constant 0 : index
    %c0_20 = arith.constant 0 : index
    %39 = vector.load %arg8[%c0_19, %c0_20] : memref<1x128xf32, #tpu.memory_space<vmem>>, vector<1x128xf32>
    tpu.vector_store %arg8[%c0_19, %c0_20], %38 {strides = array<i32>} : memref<1x128xf32, #tpu.memory_space<vmem>>, vector<1x128xf32>,
    %c0_i32_21 = arith.constant 0 : i32
    %40 = arith.cmpi eq, %arg1, %c0_i32_21 : i32
    %41 = arith.extui %40 : i1 to i32
    %c0_i32_22 = arith.constant 0 : i32
    %42 = arith.cmpi ne, %41, %c0_i32_22 : i32
    scf.if %42 {
      %c0_23 = arith.constant 0 : index
      %c0_24 = arith.constant 0 : index
      %43 = vector.load %arg4[%c0_23, %c0_24] : memref<1x128xf32, #tpu.memory_space<vmem>>, vector<1x128xf32>
      %c0_25 = arith.constant 0 : index
      %c0_26 = arith.constant 0 : index
      %44 = vector.load %arg7[%c0_25, %c0_26] : memref<1x128xf32, #tpu.memory_space<vmem>>, vector<1x128xf32>
      %45 = arith.mulf %43, %44 : vector<1x128xf32>
      %c0_27 = arith.constant 0 : index
      %c0_28 = arith.constant 0 : index
      %46 = vector.load %arg8[%c0_27, %c0_28] : memref<1x128xf32, #tpu.memory_space<vmem>>, vector<1x128xf32>
      %47 = arith.mulf %45, %46 : vector<1x128xf32>
      %c0_29 = arith.constant 0 : index
      %c0_30 = arith.constant 0 : index
      %48 = vector.load %arg6[%c0_29, %c0_30] : memref<1x128xf32, #tpu.memory_space<vmem>>, vector<1x128xf32>
      tpu.vector_store %arg6[%c0_29, %c0_30], %47 {strides = array<i32>} : memref<1x128xf32, #tpu.memory_space<vmem>>, vector<1x128xf32>,
    } else {
    }
    return
  }
  func.func @transform_0(%arg0: i32, %arg1: i32) -> (i32, i32) {
    %c0_i32 = arith.constant 0 : i32
    %c0_i32_0 = arith.constant 0 : i32
    return %c0_i32, %arg0 : i32, i32
  }
  func.func @transform_1(%arg0: i32, %arg1: i32) -> (i32, i32) {
    %c0_i32 = arith.constant 0 : i32
    %c0_i32_0 = arith.constant 0 : i32
    return %c0_i32, %arg0 : i32, i32
  }
  func.func @transform_2(%arg0: i32, %arg1: i32) -> (i32, i32) {
    %c0_i32 = arith.constant 0 : i32
    %c0_i32_0 = arith.constant 0 : i32
    return %c0_i32, %arg0 : i32, i32
  }
  func.func @transform_3(%arg0: i32, %arg1: i32) -> (i32, i32) {
    %c0_i32 = arith.constant 0 : i32
    %c0_i32_0 = arith.constant 0 : i32
    return %c0_i32, %arg1 : i32, i32
  }
  func.func @transform_4(%arg0: i32, %arg1: i32) -> (i32, i32) {
    %c0_i32 = arith.constant 0 : i32
    %c0_i32_0 = arith.constant 0 : i32
    return %c0_i32, %arg0 : i32, i32
  }
}

</mosaic_0001>

<llo_original>
// kernel: random_mask_subgraphs.4
$region0: #{random_mask_subgraphs.4}
  #allocation0 [shape = 'u32[]', space=smem, size = 0x4, offset = 0x4, fixed_abs, tag = 'smem constant byte address 0x4 - core index']
  #allocation1 [shape = 'u32[144,128]{1,0:T(1,128)}', space=vmem, size = 0x12000, scoped, tag = 'internal scratch']
  %s0 = inlined_call_operand.vmem [shape: s32[1,256], index: 0, kind: input, shape index: {}]
  %s1 = inlined_call_operand.vmem [shape: s32[1,256], index: 1, kind: input, shape index: {}]
  %s2 = inlined_call_operand.vmem [shape: f32[1,256], index: 2, kind: input, shape index: {}]
  %s3 = inlined_call_operand.vmem [shape: f32[1,128], index: 3, kind: input, shape index: {}]
  %s4 = inlined_call_operand.vmem [shape: f32[1,256], index: 4, kind: output, shape index: {}]
  %s5 = sld [smem:[#allocation0]]
  $region57: #{random_mask_subgraphs.4} parent=0
    _
  %s7 = ssub.s32 1, %s5
  %s8 = scalar_select 0, %s7, %s5
  loop: start=0, step=1, limit=4
  $region2: #{random_mask_subgraphs.4} parent=0 // loop_pre_header
    _
  $region3: #{random_mask_subgraphs.4} parent=0 // loop_header
    %s10 = sphi 0, %s14
    %p11 = scmp.ge.s32.totalorder %s10, 4
    %s17 = sphi 0, %s29
    %s18 = sphi 0, %s25
    %s19 = sphi 0, %s17
    %s20 = sphi 0, %s18
    %s21 = sphi 0, %s19
    %s22 = sphi 0, %s20
    %s32 = sphi 0, %s34
    %s35 = sphi 0, %s32
    %s36 = sphi 0, %s35
    %s52 = sphi 0, %s36
    %s58 = sphi 0, %s60
    %s61 = sphi 0, %s58
    %s62 = sphi 0, %s61
    %s78 = sphi 0, %s62
    %s84 = sphi 0, %s86
    %s87 = sphi 0, %s84
    %s88 = sphi 0, %s87
    %s104 = sphi 0, %s88
    %s110 = sphi 0, %s112
    %s113 = sphi 0, %s110
    %s114 = sphi 0, %s113
    %s130 = sphi 0, %s114
    %s136 = sphi 0, %s138
    %s139 = sphi 0, %s136
    %s140 = sphi 0, %s139
    %s156 = sphi 0, %s140
  $region4: #{random_mask_subgraphs.4} parent=0 // loop_header_branch
    %13 = sbr.rel (%p11) target = $region8
  $region5: #{random_mask_subgraphs.4} parent=0 // loop_body
    %s15 = ssub.s32 %s10, 1
    %s16 = ssub.s32 %s10, 2
    %s23 = sadd.s32 1, %s18
    %p24 = scmp.ge.s32.totalorder %s23, 1
    %s25 = scalar_select %p24, 0, %s23
    %s26 = sadd.s32 1, %s17
    %s27 = scalar_select %p24, %s26, %s17
    %p28 = scmp.ge.s32.totalorder %s27, 2
    %s29 = scalar_select %p28, 0, %s27
    %s30 = ssub.s32 %s17, %s29
    %p31 = scmp.eq.s32.totalorder %s30, 0
    %s33 = sadd.s32 %s32, 1
    %s34 = scalar_select %p31, %s32, %s33
    %p37 = pneg %p31
    %p38 = scmp.eq.s32.totalorder %s10, 1
    %p39 = por %p37, %p38
    %p40 = scmp.ne.s32.totalorder %s32, %s35
    %p41 = scmp.eq.s32.totalorder %s10, 0
    %p42 = por %p40, %p41
    %p43 = scmp.ne.s32.totalorder %s32, %s35
    %p44 = scmp.eq.s32.totalorder %s15, 1
    %p45 = por %p43, %p44
    %p46 = scmp.ne.s32.totalorder %s35, %s36
    %p47 = scmp.eq.s32.totalorder %s15, 0
    %p48 = por %p46, %p47
    %p49 = scmp.ne.s32.totalorder %s35, %s36
    %p50 = scmp.eq.s32.totalorder %s16, 1
    %p51 = por %p49, %p50
    %p53 = scmp.ne.s32.totalorder %s36, %s52
    %p54 = scmp.eq.s32.totalorder %s16, 0
    %p55 = por %p53, %p54
    %s56 = ssub.s32 %s17, %s29
    %p57 = scmp.eq.s32.totalorder %s56, 0
    %s59 = sadd.s32 %s58, 1
    %s60 = scalar_select %p57, %s58, %s59
    %p63 = pneg %p57
    %p64 = scmp.eq.s32.totalorder %s10, 1
    %p65 = por %p63, %p64
    %p66 = scmp.ne.s32.totalorder %s58, %s61
    %p67 = scmp.eq.s32.totalorder %s10, 0
    %p68 = por %p66, %p67
    %p69 = scmp.ne.s32.totalorder %s58, %s61
    %p70 = scmp.eq.s32.totalorder %s15, 1
    %p71 = por %p69, %p70
    %p72 = scmp.ne.s32.totalorder %s61, %s62
    %p73 = scmp.eq.s32.totalorder %s15, 0
    %p74 = por %p72, %p73
    %p75 = scmp.ne.s32.totalorder %s61, %s62
    %p76 = scmp.eq.s32.totalorder %s16, 1
    %p77 = por %p75, %p76
    %p79 = scmp.ne.s32.totalorder %s62, %s78
    %p80 = scmp.eq.s32.totalorder %s16, 0
    %p81 = por %p79, %p80
    %s82 = ssub.s32 %s17, %s29
    %p83 = scmp.eq.s32.totalorder %s82, 0
    %s85 = sadd.s32 %s84, 1
    %s86 = scalar_select %p83, %s84, %s85
    %p89 = pneg %p83
    %p90 = scmp.eq.s32.totalorder %s10, 1
    %p91 = por %p89, %p90
    %p92 = scmp.ne.s32.totalorder %s84, %s87
    %p93 = scmp.eq.s32.totalorder %s10, 0
    %p94 = por %p92, %p93
    %p95 = scmp.ne.s32.totalorder %s84, %s87
    %p96 = scmp.eq.s32.totalorder %s15, 1
    %p97 = por %p95, %p96
    %p98 = scmp.ne.s32.totalorder %s87, %s88
    %p99 = scmp.eq.s32.totalorder %s15, 0
    %p100 = por %p98, %p99
    %p101 = scmp.ne.s32.totalorder %s87, %s88
    %p102 = scmp.eq.s32.totalorder %s16, 1
    %p103 = por %p101, %p102
    %p105 = scmp.ne.s32.totalorder %s88, %s104
    %p106 = scmp.eq.s32.totalorder %s16, 0
    %p107 = por %p105, %p106
    %s108 = ssub.s32 %s18, %s25
    %p109 = scmp.eq.s32.totalorder %s108, 0
    %s111 = sadd.s32 %s110, 1
    %s112 = scalar_select %p109, %s110, %s111
    %p115 = pneg %p109
    %p116 = scmp.eq.s32.totalorder %s10, 1
    %p117 = por %p115, %p116
    %p118 = scmp.ne.s32.totalorder %s110, %s113
    %p119 = scmp.eq.s32.totalorder %s10, 0
    %p120 = por %p118, %p119
    %p121 = scmp.ne.s32.totalorder %s110, %s113
    %p122 = scmp.eq.s32.totalorder %s15, 1
    %p123 = por %p121, %p122
    %p124 = scmp.ne.s32.totalorder %s113, %s114
    %p125 = scmp.eq.s32.totalorder %s15, 0
    %p126 = por %p124, %p125
    %p127 = scmp.ne.s32.totalorder %s113, %s114
    %p128 = scmp.eq.s32.totalorder %s16, 1
    %p129 = por %p127, %p128
    %p131 = scmp.ne.s32.totalorder %s114, %s130
    %p132 = scmp.eq.s32.totalorder %s16, 0
    %p133 = por %p131, %p132
    %s134 = ssub.s32 %s17, %s29
    %p135 = scmp.eq.s32.totalorder %s134, 0
    %s137 = sadd.s32 %s136, 1
    %s138 = scalar_select %p135, %s136, %s137
    %p141 = pneg %p135
    %p142 = scmp.eq.s32.totalorder %s10, 1
    %p143 = por %p141, %p142
    %p144 = scmp.ne.s32.totalorder %s136, %s139
    %p145 = scmp.eq.s32.totalorder %s10, 0
    %p146 = por %p144, %p145
    %p147 = scmp.ne.s32.totalorder %s136, %s139
    %p148 = scmp.eq.s32.totalorder %s15, 1
    %p149 = por %p147, %p148
    %p150 = scmp.ne.s32.totalorder %s139, %s140
    %p151 = scmp.eq.s32.totalorder %s15, 0
    %p152 = por %p150, %p151
    %p153 = scmp.ne.s32.totalorder %s139, %s140
    %p154 = scmp.eq.s32.totalorder %s16, 1
    %p155 = por %p153, %p154
    %p157 = scmp.ne.s32.totalorder %s140, %s156
    %p158 = scmp.eq.s32.totalorder %s16, 0
    %p159 = por %p157, %p158
    %p160 = scmp.le.s32.totalorder 1, %s10
    %p161 = scmp.lt.s32.totalorder %s10, 3
    %p162 = pnand %p160, %p161
    %p163 = pneg %p162
    // Predicated region
    $region9: #{random_mask_subgraphs.4} parent=5 // pred_check
      _
    $region10: #{random_mask_subgraphs.4} parent=5 // pred_check_branch
      %165 = sbr.rel (%p162) target = $region12
    $region11: #{random_mask_subgraphs.4} parent=5 // pred_region
      %s166 = ssub.s32 %s10, 1
      // Predicated region
      $region13: #{random_mask_subgraphs.4} parent=11 // pred_check
        %p167 = pneg %p126
      $region14: #{random_mask_subgraphs.4} parent=11 // pred_check_branch
        %169 = sbr.rel (%p167) target = $region16
      $region15: #{random_mask_subgraphs.4} parent=11 // pred_region
        %p170 = scmp.lt.s32.totalorder %s20, 0
        %s171 = scalar_select %p170, %s20, 0
        %s172 = scalar_lea.vmem %s3, %s171
      $region16: #{random_mask_subgraphs.4} parent=11 // pred_fallthru
        _
    $region12: #{random_mask_subgraphs.4} parent=5 // pred_fallthru
      _
    %p173 = scmp.lt.s32.totalorder %s10, 2
    // Predicated region
    $region17: #{random_mask_subgraphs.4} parent=5 // pred_check
      %p174 = pneg %p173
    $region18: #{random_mask_subgraphs.4} parent=5 // pred_check_branch
      %176 = sbr.rel (%p174) target = $region20
    $region19: #{random_mask_subgraphs.4} parent=5 // pred_region
      // Predicated region
      $region21: #{random_mask_subgraphs.4} parent=19 // pred_check
        %p177 = pneg %p42
      $region22: #{random_mask_subgraphs.4} parent=19 // pred_check_branch
        %179 = sbr.rel (%p177) target = $region24
      $region23: #{random_mask_subgraphs.4} parent=19 // pred_region
        %p180 = scmp.lt.s32.totalorder %s17, 1
        %s181 = scalar_select %p180, %s17, 1
        %s182 = scalar_lea.vmem %s0, %s181
      $region24: #{random_mask_subgraphs.4} parent=19 // pred_fallthru
        _
      // Predicated region
      $region25: #{random_mask_subgraphs.4} parent=19 // pred_check
        %p183 = pneg %p68
      $region26: #{random_mask_subgraphs.4} parent=19 // pred_check_branch
        %185 = sbr.rel (%p183) target = $region28
      $region27: #{random_mask_subgraphs.4} parent=19 // pred_region
        %p186 = scmp.lt.s32.totalorder %s17, 1
        %s187 = scalar_select %p186, %s17, 1
        %s188 = scalar_lea.vmem %s1, %s187
      $region28: #{random_mask_subgraphs.4} parent=19 // pred_fallthru
        _
      // Predicated region
      $region29: #{random_mask_subgraphs.4} parent=19 // pred_check
        %p189 = pneg %p94
      $region30: #{random_mask_subgraphs.4} parent=19 // pred_check_branch
        %191 = sbr.rel (%p189) target = $region32
      $region31: #{random_mask_subgraphs.4} parent=19 // pred_region
        %p192 = scmp.lt.s32.totalorder %s17, 1
        %s193 = scalar_select %p192, %s17, 1
        %s194 = scalar_lea.vmem %s2, %s193
      $region32: #{random_mask_subgraphs.4} parent=19 // pred_fallthru
        _
    $region20: #{random_mask_subgraphs.4} parent=5 // pred_fallthru
      _
    %p195 = scmp.le.s32.totalorder 1, %s10
    %p196 = scmp.lt.s32.totalorder %s10, 3
    %p197 = pnand %p195, %p196
    %p198 = pneg %p197
    // Predicated region
    $region33: #{random_mask_subgraphs.4} parent=5 // pred_check
      _
    $region34: #{random_mask_subgraphs.4} parent=5 // pred_check_branch
      %200 = sbr.rel (%p197) target = $region36
    $region35: #{random_mask_subgraphs.4} parent=5 // pred_region
      %s201 = ssub.s32 %s10, 1
      %p202 = scmp.lt.s32.totalorder %s19, 1
      %s203 = scalar_select %p202, %s19, 1
      %s204 = scalar_lea.vmem %s0, %s203
      %p205 = pneg %p48
      %p206 = pneg %p45
      %p207 = scmp.lt.s32.totalorder %s19, 1
      %s208 = scalar_select %p207, %s19, 1
      %s209 = scalar_lea.vmem %s1, %s208
      %p210 = pneg %p74
      %p211 = pneg %p71
      %p212 = scmp.lt.s32.totalorder %s19, 1
      %s213 = scalar_select %p212, %s19, 1
      %s214 = scalar_lea.vmem %s2, %s213
      %p215 = pneg %p100
      %p216 = pneg %p97
      %p217 = scmp.lt.s32.totalorder %s20, 0
      %s218 = scalar_select %p217, %s20, 0
      %s219 = scalar_lea.vmem %s3, %s218
      %p220 = pneg %p126
      %p221 = pneg %p123
      %p222 = pneg %p152
      %p223 = pneg %p149
      %p224 = scmp.lt.s32.totalorder %s19, 1
      %s225 = scalar_select %p224, %s19, 1
      %s226 = scalar_lea.vmem %s4, %s225
      %p227 = scmp.lt.s32.totalorder %s19, 1
      %s228 = scalar_select %p227, %s19, 1
      %s229 = scalar_lea.vmem %s0, %s228
      %p230 = scmp.lt.s32.totalorder %s19, 1
      %s231 = scalar_select %p230, %s19, 1
      %s232 = scalar_lea.vmem %s1, %s231
      %p233 = scmp.lt.s32.totalorder %s19, 1
      %s234 = scalar_select %p233, %s19, 1
      %s235 = scalar_lea.vmem %s2, %s234
      %p236 = scmp.lt.s32.totalorder %s20, 0
      %s237 = scalar_select %p236, %s20, 0
      %s238 = scalar_lea.vmem %s3, %s237
      %p239 = scmp.lt.s32.totalorder %s19, 1
      %s240 = scalar_select %p239, %s19, 1
      %s241 = scalar_lea.vmem %s4, %s240
      %p243 = scmp.eq.s32.totalorder %s20, 0
      // Predicated region
      $region37: #{random_mask_subgraphs.4} parent=35 // pred_check
        %p244 = pneg %p243
      $region38: #{random_mask_subgraphs.4} parent=35 // pred_check_branch
        %246 = sbr.rel (%p244) target = $region40
      $region39: #{random_mask_subgraphs.4} parent=35 // pred_region
        %247 = vst [vmem:[%s241] sm:$0x1] 0.0
      $region40: #{random_mask_subgraphs.4} parent=35 // pred_fallthru
        _
      %v248 = vld [vmem:[%s229] sm:$0x1]
      %v249 = vld [vmem:[%s232] sm:$0x1]
      %s250 = smul.u32 %s20, 128
      %v251 = vlaneseq
      %v252 = vshrl.u32 %v251, 7
      %v253 = vadd.s32 %v252, 8
      %v254 = vadd.s32 %v252, 16
      %v255 = vadd.s32 %v252, 24
      %v256 = vadd.s32 %v252, 32
      %v257 = vadd.s32 %v252, 40
      %v258 = vadd.s32 %v252, 48
      %v259 = vadd.s32 %v252, 56
      %v260 = vadd.s32 %v252, 64
      %v261 = vadd.s32 %v252, 72
      %v262 = vadd.s32 %v252, 80
      %v263 = vadd.s32 %v252, 88
      %v264 = vadd.s32 %v252, 96
      %v265 = vadd.s32 %v252, 104
      %v266 = vadd.s32 %v252, 112
      %v267 = vadd.s32 %v252, 120
      %v268 = vstv %s250
      %v269 = vadd.s32 %v268, %v252
      %v270 = vadd.s32 %v268, %v253
      %v271 = vadd.s32 %v268, %v254
      %v272 = vadd.s32 %v268, %v255
      %v273 = vadd.s32 %v268, %v256
      %v274 = vadd.s32 %v268, %v257
      %v275 = vadd.s32 %v268, %v258
      %v276 = vadd.s32 %v268, %v259
      %v277 = vadd.s32 %v268, %v260
      %v278 = vadd.s32 %v268, %v261
      %v279 = vadd.s32 %v268, %v262
      %v280 = vadd.s32 %v268, %v263
      %v281 = vadd.s32 %v268, %v264
      %v282 = vadd.s32 %v268, %v265
      %v283 = vadd.s32 %v268, %v266
      %v284 = vadd.s32 %v268, %v267
      %v285 = vlaneseq
      %v286 = vshrl.u32 %v285, 7
      %v287 = vsub.s32 0, %v286
      %v288 = vrot.slane %v248, %v287
      %vm289 = vcmp.eq.s32.totalorder %v288, %v269
      %vm290 = vcmp.eq.s32.totalorder %v288, %v270
      %vm291 = vcmp.eq.s32.totalorder %v288, %v271
      %vm292 = vcmp.eq.s32.totalorder %v288, %v272
      %vm293 = vcmp.eq.s32.totalorder %v288, %v273
      %vm294 = vcmp.eq.s32.totalorder %v288, %v274
      %vm295 = vcmp.eq.s32.totalorder %v288, %v275
      %vm296 = vcmp.eq.s32.totalorder %v288, %v276
      %vm297 = vcmp.eq.s32.totalorder %v288, %v277
      %vm298 = vcmp.eq.s32.totalorder %v288, %v278
      %vm299 = vcmp.eq.s32.totalorder %v288, %v279
      %vm300 = vcmp.eq.s32.totalorder %v288, %v280
      %vm301 = vcmp.eq.s32.totalorder %v288, %v281
      %vm302 = vcmp.eq.s32.totalorder %v288, %v282
      %vm303 = vcmp.eq.s32.totalorder %v288, %v283
      %vm304 = vcmp.eq.s32.totalorder %v288, %v284
      %v305 = vlaneseq
      %v306 = vshrl.u32 %v305, 7
      %v307 = vsub.s32 0, %v306
      %v308 = vrot.slane %v249, %v307
      %vm309 = vcmp.eq.s32.totalorder %v308, %v269
      %vm310 = vcmp.eq.s32.totalorder %v308, %v270
      %vm311 = vcmp.eq.s32.totalorder %v308, %v271
      %vm312 = vcmp.eq.s32.totalorder %v308, %v272
      %vm313 = vcmp.eq.s32.totalorder %v308, %v273
      %vm314 = vcmp.eq.s32.totalorder %v308, %v274
      %vm315 = vcmp.eq.s32.totalorder %v308, %v275
      %vm316 = vcmp.eq.s32.totalorder %v308, %v276
      %vm317 = vcmp.eq.s32.totalorder %v308, %v277
      %vm318 = vcmp.eq.s32.totalorder %v308, %v278
      %vm319 = vcmp.eq.s32.totalorder %v308, %v279
      %vm320 = vcmp.eq.s32.totalorder %v308, %v280
      %vm321 = vcmp.eq.s32.totalorder %v308, %v281
      %vm322 = vcmp.eq.s32.totalorder %v308, %v282
      %vm323 = vcmp.eq.s32.totalorder %v308, %v283
      %vm324 = vcmp.eq.s32.totalorder %v308, %v284
      %vm325 = vmor %vm289, %vm309
      %vm326 = vmor %vm290, %vm310
      %vm327 = vmor %vm291, %vm311
      %vm328 = vmor %vm292, %vm312
      %vm329 = vmor %vm293, %vm313
      %vm330 = vmor %vm294, %vm314
      %vm331 = vmor %vm295, %vm315
      %vm332 = vmor %vm296, %vm316
      %vm333 = vmor %vm297, %vm317
      %vm334 = vmor %vm298, %vm318
      %vm335 = vmor %vm299, %vm319
      %vm336 = vmor %vm300, %vm320
      %vm337 = vmor %vm301, %vm321
      %vm338 = vmor %vm302, %vm322
      %vm339 = vmor %vm303, %vm323
      %vm340 = vmor %vm304, %vm324
      %v341 = vsel %vm325, 1.0, 0.0
      %v342 = vsel %vm326, 1.0, 0.0
      %v343 = vsel %vm327, 1.0, 0.0
      %v344 = vsel %vm328, 1.0, 0.0
      %v345 = vsel %vm329, 1.0, 0.0
      %v346 = vsel %vm330, 1.0, 0.0
      %v347 = vsel %vm331, 1.0, 0.0
      %v348 = vsel %vm332, 1.0, 0.0
      %v349 = vsel %vm333, 1.0, 0.0
      %v350 = vsel %vm334, 1.0, 0.0
      %v351 = vsel %vm335, 1.0, 0.0
      %v352 = vsel %vm336, 1.0, 0.0
      %v353 = vsel %vm337, 1.0, 0.0
      %v354 = vsel %vm338, 1.0, 0.0
      %v355 = vsel %vm339, 1.0, 0.0
      %v356 = vsel %vm340, 1.0, 0.0
      %v357 = vpack.c.bf16 %v342, %v341
      %v358 = vpack.c.bf16 %v344, %v343
      %v359 = vpack.c.bf16 %v346, %v345
      %v360 = vpack.c.bf16 %v348, %v347
      %v361 = vpack.c.bf16 %v350, %v349
      %v362 = vpack.c.bf16 %v352, %v351
      %v363 = vpack.c.bf16 %v354, %v353
      %v364 = vpack.c.bf16 %v356, %v355
      %v365 = vld [vmem:[%s238] sm:$0x1]
      %v366 = vpack.c.bf16 %v365, %v365
      %v367 = vld [vmem:[%s241] sm:$0x1]
      %368 = vmatprep.subr.bf16.mxu0 0
      %369 = vmatpush1.bf16.msra.mxu0 %v357
      %370 = vmatprep.subr.bf16.mxu0 0
      %371 = vmatpush1.bf16.msra.mxu0 %v358
      %372 = vmatprep.subr.bf16.mxu0 0
      %373 = vmatpush1.bf16.msra.mxu0 %v359
      %374 = vmatprep.subr.bf16.mxu0 0
      %375 = vmatpush1.bf16.msra.mxu0 %v360
      %376 = vmatprep.subr.bf16.mxu0 0
      %377 = vmatpush1.bf16.msra.mxu0 %v361
      %378 = vmatprep.subr.bf16.mxu0 0
      %379 = vmatpush1.bf16.msra.mxu0 %v362
      %380 = vmatprep.subr.bf16.mxu0 0
      %381 = vmatpush1.bf16.msra.mxu0 %v363
      %382 = vmatprep.subr.bf16.mxu0 0
      %383 = vmatpush1.bf16.msra.mxu0 %v364
      %384 = vmatprep.subr.bf16.mxu0 0
      %385 = vmatpush1.bf16.msra.mxu0 0
      %386 = vmatprep.subr.bf16.mxu0 0
      %387 = vmatpush1.bf16.msra.mxu0 0
      %388 = vmatprep.subr.bf16.mxu0 0
      %389 = vmatpush1.bf16.msra.mxu0 0
      %390 = vmatprep.subr.bf16.mxu0 0
      %391 = vmatpush1.bf16.msra.mxu0 0
      %392 = vmatprep.subr.bf16.mxu0 0
      %393 = vmatpush1.bf16.msra.mxu0 0
      %394 = vmatprep.subr.bf16.mxu0 0
      %395 = vmatpush1.bf16.msra.mxu0 0
      %396 = vmatprep.subr.bf16.mxu0 0
      %397 = vmatpush1.bf16.msra.mxu0 0
      %398 = vmatprep.subr.bf16.mxu0 0
      %399 = vmatpush1.bf16.msra.mxu0 0
      %400 = vmatprep.mubr.bf16.mxu0 0
      %401 = vmatmul.mubr.bf16.gmra.mrb[0].mxu0 %v366
      %v402 = vpop.f32.mrb[0].mxu0
      %v403 = vadd.f32 0.0, %v402
      %v404 = vpop.f32.mrb[0].mxu0
      %v405 = vpop.f32.mrb[0].mxu0
      %v406 = vpop.f32.mrb[0].mxu0
      %407 = vdwg.mxu0
      %v408 = vadd.f32 %v367, %v403
      %409 = vst [vmem:[%s241] sm:$0x1] %v408
      // Predicated region
      $region41: #{random_mask_subgraphs.4} parent=35 // pred_check
        %p410 = pneg %p243
      $region42: #{random_mask_subgraphs.4} parent=35 // pred_check_branch
        %412 = sbr.rel (%p410) target = $region44
      $region43: #{random_mask_subgraphs.4} parent=35 // pred_region
        %v413 = vld [vmem:[%s235] sm:$0x1]
        %vm414 = vcmp.gt.f32.partialorder %v413, 0.0
        %v415 = vld [vmem:[%s241] sm:$0x1]
        %vm416 = vcmp.gt.f32.partialorder %v415, 0.0
        %vm417 = vmand %vm414, %vm416
        %v418 = vsel %vm417, 1.0, 0.0
        %419 = vst [vmem:[%s241] sm:$0x1] %v418
      $region44: #{random_mask_subgraphs.4} parent=35 // pred_fallthru
        _
      %p420 = scmp.lt.s32.totalorder %s19, 1
      %s421 = scalar_select %p420, %s19, 1
      %s422 = scalar_lea.vmem %s4, %s421
      // Predicated region
      $region45: #{random_mask_subgraphs.4} parent=35 // pred_check
        %p423 = pneg %p149
      $region46: #{random_mask_subgraphs.4} parent=35 // pred_check_branch
        %425 = sbr.rel (%p423) target = $region48
      $region47: #{random_mask_subgraphs.4} parent=35 // pred_region
        _
      $region48: #{random_mask_subgraphs.4} parent=35 // pred_fallthru
        _
    $region36: #{random_mask_subgraphs.4} parent=5 // pred_fallthru
      _
    %p426 = scmp.le.s32.totalorder 2, %s10
    // Predicated region
    $region49: #{random_mask_subgraphs.4} parent=5 // pred_check
      %p427 = pneg %p426
    $region50: #{random_mask_subgraphs.4} parent=5 // pred_check_branch
      %429 = sbr.rel (%p427) target = $region52
    $region51: #{random_mask_subgraphs.4} parent=5 // pred_region
      %s430 = ssub.s32 %s10, 2
      // Predicated region
      $region53: #{random_mask_subgraphs.4} parent=51 // pred_check
        %p431 = pneg %p155
      $region54: #{random_mask_subgraphs.4} parent=51 // pred_check_branch
        %433 = sbr.rel (%p431) target = $region56
      $region55: #{random_mask_subgraphs.4} parent=51 // pred_region
        %p434 = scmp.lt.s32.totalorder %s21, 1
        %s435 = scalar_select %p434, %s21, 1
        %s436 = scalar_lea.vmem %s4, %s435
      $region56: #{random_mask_subgraphs.4} parent=51 // pred_fallthru
        _
    $region52: #{random_mask_subgraphs.4} parent=5 // pred_fallthru
      _
  $region6: #{random_mask_subgraphs.4} parent=0 // loop_footer
    %s14 = sadd.s32 1, %s10
  $region7: #{random_mask_subgraphs.4} parent=0 // loop_footer_branch
    %9 = sbr.rel target = $region3
  $region8: #{random_mask_subgraphs.4} parent=0 // loop_exit
    _

// kernel: random_mask_subgraphs.5
$region0: #{random_mask_subgraphs.5}
  #allocation0 [shape = 'u32[]', space=smem, size = 0x4, offset = 0x4, fixed_abs, tag = 'smem constant byte address 0x4 - core index']
  #allocation1 [shape = 'u32[144,128]{1,0:T(1,128)}', space=vmem, size = 0x12000, scoped, tag = 'internal scratch']
  %s0 = inlined_call_operand.vmem [shape: s32[1,256], index: 0, kind: input, shape index: {}]
  %s1 = inlined_call_operand.vmem [shape: s32[1,256], index: 1, kind: input, shape index: {}]
  %s2 = inlined_call_operand.vmem [shape: f32[1,256], index: 2, kind: input, shape index: {}]
  %s3 = inlined_call_operand.vmem [shape: f32[1,128], index: 3, kind: input, shape index: {}]
  %s4 = inlined_call_operand.vmem [shape: f32[1,256], index: 4, kind: output, shape index: {}]
  %s5 = sld [smem:[#allocation0]]
  $region57: #{random_mask_subgraphs.5} parent=0
    _
  %s7 = ssub.s32 1, %s5
  %s8 = scalar_select 0, %s7, %s5
  loop: start=0, step=1, limit=4
  $region2: #{random_mask_subgraphs.5} parent=0 // loop_pre_header
    _
  $region3: #{random_mask_subgraphs.5} parent=0 // loop_header
    %s10 = sphi 0, %s14
    %p11 = scmp.ge.s32.totalorder %s10, 4
    %s17 = sphi 0, %s29
    %s18 = sphi 0, %s25
    %s19 = sphi 0, %s17
    %s20 = sphi 0, %s18
    %s21 = sphi 0, %s19
    %s22 = sphi 0, %s20
    %s32 = sphi 0, %s34
    %s35 = sphi 0, %s32
    %s36 = sphi 0, %s35
    %s52 = sphi 0, %s36
    %s58 = sphi 0, %s60
    %s61 = sphi 0, %s58
    %s62 = sphi 0, %s61
    %s78 = sphi 0, %s62
    %s84 = sphi 0, %s86
    %s87 = sphi 0, %s84
    %s88 = sphi 0, %s87
    %s104 = sphi 0, %s88
    %s110 = sphi 0, %s112
    %s113 = sphi 0, %s110
    %s114 = sphi 0, %s113
    %s130 = sphi 0, %s114
    %s136 = sphi 0, %s138
    %s139 = sphi 0, %s136
    %s140 = sphi 0, %s139
    %s156 = sphi 0, %s140
  $region4: #{random_mask_subgraphs.5} parent=0 // loop_header_branch
    %13 = sbr.rel (%p11) target = $region8
  $region5: #{random_mask_subgraphs.5} parent=0 // loop_body
    %s15 = ssub.s32 %s10, 1
    %s16 = ssub.s32 %s10, 2
    %s23 = sadd.s32 1, %s18
    %p24 = scmp.ge.s32.totalorder %s23, 1
    %s25 = scalar_select %p24, 0, %s23
    %s26 = sadd.s32 1, %s17
    %s27 = scalar_select %p24, %s26, %s17
    %p28 = scmp.ge.s32.totalorder %s27, 2
    %s29 = scalar_select %p28, 0, %s27
    %s30 = ssub.s32 %s17, %s29
    %p31 = scmp.eq.s32.totalorder %s30, 0
    %s33 = sadd.s32 %s32, 1
    %s34 = scalar_select %p31, %s32, %s33
    %p37 = pneg %p31
    %p38 = scmp.eq.s32.totalorder %s10, 1
    %p39 = por %p37, %p38
    %p40 = scmp.ne.s32.totalorder %s32, %s35
    %p41 = scmp.eq.s32.totalorder %s10, 0
    %p42 = por %p40, %p41
    %p43 = scmp.ne.s32.totalorder %s32, %s35
    %p44 = scmp.eq.s32.totalorder %s15, 1
    %p45 = por %p43, %p44
    %p46 = scmp.ne.s32.totalorder %s35, %s36
    %p47 = scmp.eq.s32.totalorder %s15, 0
    %p48 = por %p46, %p47
    %p49 = scmp.ne.s32.totalorder %s35, %s36
    %p50 = scmp.eq.s32.totalorder %s16, 1
    %p51 = por %p49, %p50
    %p53 = scmp.ne.s32.totalorder %s36, %s52
    %p54 = scmp.eq.s32.totalorder %s16, 0
    %p55 = por %p53, %p54
    %s56 = ssub.s32 %s17, %s29
    %p57 = scmp.eq.s32.totalorder %s56, 0
    %s59 = sadd.s32 %s58, 1
    %s60 = scalar_select %p57, %s58, %s59
    %p63 = pneg %p57
    %p64 = scmp.eq.s32.totalorder %s10, 1
    %p65 = por %p63, %p64
    %p66 = scmp.ne.s32.totalorder %s58, %s61
    %p67 = scmp.eq.s32.totalorder %s10, 0
    %p68 = por %p66, %p67
    %p69 = scmp.ne.s32.totalorder %s58, %s61
    %p70 = scmp.eq.s32.totalorder %s15, 1
    %p71 = por %p69, %p70
    %p72 = scmp.ne.s32.totalorder %s61, %s62
    %p73 = scmp.eq.s32.totalorder %s15, 0
    %p74 = por %p72, %p73
    %p75 = scmp.ne.s32.totalorder %s61, %s62
    %p76 = scmp.eq.s32.totalorder %s16, 1
    %p77 = por %p75, %p76
    %p79 = scmp.ne.s32.totalorder %s62, %s78
    %p80 = scmp.eq.s32.totalorder %s16, 0
    %p81 = por %p79, %p80
    %s82 = ssub.s32 %s17, %s29
    %p83 = scmp.eq.s32.totalorder %s82, 0
    %s85 = sadd.s32 %s84, 1
    %s86 = scalar_select %p83, %s84, %s85
    %p89 = pneg %p83
    %p90 = scmp.eq.s32.totalorder %s10, 1
    %p91 = por %p89, %p90
    %p92 = scmp.ne.s32.totalorder %s84, %s87
    %p93 = scmp.eq.s32.totalorder %s10, 0
    %p94 = por %p92, %p93
    %p95 = scmp.ne.s32.totalorder %s84, %s87
    %p96 = scmp.eq.s32.totalorder %s15, 1
    %p97 = por %p95, %p96
    %p98 = scmp.ne.s32.totalorder %s87, %s88
    %p99 = scmp.eq.s32.totalorder %s15, 0
    %p100 = por %p98, %p99
    %p101 = scmp.ne.s32.totalorder %s87, %s88
    %p102 = scmp.eq.s32.totalorder %s16, 1
    %p103 = por %p101, %p102
    %p105 = scmp.ne.s32.totalorder %s88, %s104
    %p106 = scmp.eq.s32.totalorder %s16, 0
    %p107 = por %p105, %p106
    %s108 = ssub.s32 %s18, %s25
    %p109 = scmp.eq.s32.totalorder %s108, 0
    %s111 = sadd.s32 %s110, 1
    %s112 = scalar_select %p109, %s110, %s111
    %p115 = pneg %p109
    %p116 = scmp.eq.s32.totalorder %s10, 1
    %p117 = por %p115, %p116
    %p118 = scmp.ne.s32.totalorder %s110, %s113
    %p119 = scmp.eq.s32.totalorder %s10, 0
    %p120 = por %p118, %p119
    %p121 = scmp.ne.s32.totalorder %s110, %s113
    %p122 = scmp.eq.s32.totalorder %s15, 1
    %p123 = por %p121, %p122
    %p124 = scmp.ne.s32.totalorder %s113, %s114
    %p125 = scmp.eq.s32.totalorder %s15, 0
    %p126 = por %p124, %p125
    %p127 = scmp.ne.s32.totalorder %s113, %s114
    %p128 = scmp.eq.s32.totalorder %s16, 1
    %p129 = por %p127, %p128
    %p131 = scmp.ne.s32.totalorder %s114, %s130
    %p132 = scmp.eq.s32.totalorder %s16, 0
    %p133 = por %p131, %p132
    %s134 = ssub.s32 %s17, %s29
    %p135 = scmp.eq.s32.totalorder %s134, 0
    %s137 = sadd.s32 %s136, 1
    %s138 = scalar_select %p135, %s136, %s137
    %p141 = pneg %p135
    %p142 = scmp.eq.s32.totalorder %s10, 1
    %p143 = por %p141, %p142
    %p144 = scmp.ne.s32.totalorder %s136, %s139
    %p145 = scmp.eq.s32.totalorder %s10, 0
    %p146 = por %p144, %p145
    %p147 = scmp.ne.s32.totalorder %s136, %s139
    %p148 = scmp.eq.s32.totalorder %s15, 1
    %p149 = por %p147, %p148
    %p150 = scmp.ne.s32.totalorder %s139, %s140
    %p151 = scmp.eq.s32.totalorder %s15, 0
    %p152 = por %p150, %p151
    %p153 = scmp.ne.s32.totalorder %s139, %s140
    %p154 = scmp.eq.s32.totalorder %s16, 1
    %p155 = por %p153, %p154
    %p157 = scmp.ne.s32.totalorder %s140, %s156
    %p158 = scmp.eq.s32.totalorder %s16, 0
    %p159 = por %p157, %p158
    %p160 = scmp.le.s32.totalorder 1, %s10
    %p161 = scmp.lt.s32.totalorder %s10, 3
    %p162 = pnand %p160, %p161
    %p163 = pneg %p162
    // Predicated region
    $region9: #{random_mask_subgraphs.5} parent=5 // pred_check
      _
    $region10: #{random_mask_subgraphs.5} parent=5 // pred_check_branch
      %165 = sbr.rel (%p162) target = $region12
    $region11: #{random_mask_subgraphs.5} parent=5 // pred_region
      %s166 = ssub.s32 %s10, 1
      // Predicated region
      $region13: #{random_mask_subgraphs.5} parent=11 // pred_check
        %p167 = pneg %p126
      $region14: #{random_mask_subgraphs.5} parent=11 // pred_check_branch
        %169 = sbr.rel (%p167) target = $region16
      $region15: #{random_mask_subgraphs.5} parent=11 // pred_region
        %p170 = scmp.lt.s32.totalorder %s20, 0
        %s171 = scalar_select %p170, %s20, 0
        %s172 = scalar_lea.vmem %s3, %s171
      $region16: #{random_mask_subgraphs.5} parent=11 // pred_fallthru
        _
    $region12: #{random_mask_subgraphs.5} parent=5 // pred_fallthru
      _
    %p173 = scmp.lt.s32.totalorder %s10, 2
    // Predicated region
    $region17: #{random_mask_subgraphs.5} parent=5 // pred_check
      %p174 = pneg %p173
    $region18: #{random_mask_subgraphs.5} parent=5 // pred_check_branch
      %176 = sbr.rel (%p174) target = $region20
    $region19: #{random_mask_subgraphs.5} parent=5 // pred_region
      // Predicated region
      $region21: #{random_mask_subgraphs.5} parent=19 // pred_check
        %p177 = pneg %p42
      $region22: #{random_mask_subgraphs.5} parent=19 // pred_check_branch
        %179 = sbr.rel (%p177) target = $region24
      $region23: #{random_mask_subgraphs.5} parent=19 // pred_region
        %p180 = scmp.lt.s32.totalorder %s17, 1
        %s181 = scalar_select %p180, %s17, 1
        %s182 = scalar_lea.vmem %s0, %s181
      $region24: #{random_mask_subgraphs.5} parent=19 // pred_fallthru
        _
      // Predicated region
      $region25: #{random_mask_subgraphs.5} parent=19 // pred_check
        %p183 = pneg %p68
      $region26: #{random_mask_subgraphs.5} parent=19 // pred_check_branch
        %185 = sbr.rel (%p183) target = $region28
      $region27: #{random_mask_subgraphs.5} parent=19 // pred_region
        %p186 = scmp.lt.s32.totalorder %s17, 1
        %s187 = scalar_select %p186, %s17, 1
        %s188 = scalar_lea.vmem %s1, %s187
      $region28: #{random_mask_subgraphs.5} parent=19 // pred_fallthru
        _
      // Predicated region
      $region29: #{random_mask_subgraphs.5} parent=19 // pred_check
        %p189 = pneg %p94
      $region30: #{random_mask_subgraphs.5} parent=19 // pred_check_branch
        %191 = sbr.rel (%p189) target = $region32
      $region31: #{random_mask_subgraphs.5} parent=19 // pred_region
        %p192 = scmp.lt.s32.totalorder %s17, 1
        %s193 = scalar_select %p192, %s17, 1
        %s194 = scalar_lea.vmem %s2, %s193
      $region32: #{random_mask_subgraphs.5} parent=19 // pred_fallthru
        _
    $region20: #{random_mask_subgraphs.5} parent=5 // pred_fallthru
      _
    %p195 = scmp.le.s32.totalorder 1, %s10
    %p196 = scmp.lt.s32.totalorder %s10, 3
    %p197 = pnand %p195, %p196
    %p198 = pneg %p197
    // Predicated region
    $region33: #{random_mask_subgraphs.5} parent=5 // pred_check
      _
    $region34: #{random_mask_subgraphs.5} parent=5 // pred_check_branch
      %200 = sbr.rel (%p197) target = $region36
    $region35: #{random_mask_subgraphs.5} parent=5 // pred_region
      %s201 = ssub.s32 %s10, 1
      %p202 = scmp.lt.s32.totalorder %s19, 1
      %s203 = scalar_select %p202, %s19, 1
      %s204 = scalar_lea.vmem %s0, %s203
      %p205 = pneg %p48
      %p206 = pneg %p45
      %p207 = scmp.lt.s32.totalorder %s19, 1
      %s208 = scalar_select %p207, %s19, 1
      %s209 = scalar_lea.vmem %s1, %s208
      %p210 = pneg %p74
      %p211 = pneg %p71
      %p212 = scmp.lt.s32.totalorder %s19, 1
      %s213 = scalar_select %p212, %s19, 1
      %s214 = scalar_lea.vmem %s2, %s213
      %p215 = pneg %p100
      %p216 = pneg %p97
      %p217 = scmp.lt.s32.totalorder %s20, 0
      %s218 = scalar_select %p217, %s20, 0
      %s219 = scalar_lea.vmem %s3, %s218
      %p220 = pneg %p126
      %p221 = pneg %p123
      %p222 = pneg %p152
      %p223 = pneg %p149
      %p224 = scmp.lt.s32.totalorder %s19, 1
      %s225 = scalar_select %p224, %s19, 1
      %s226 = scalar_lea.vmem %s4, %s225
      %p227 = scmp.lt.s32.totalorder %s19, 1
      %s228 = scalar_select %p227, %s19, 1
      %s229 = scalar_lea.vmem %s0, %s228
      %p230 = scmp.lt.s32.totalorder %s19, 1
      %s231 = scalar_select %p230, %s19, 1
      %s232 = scalar_lea.vmem %s1, %s231
      %p233 = scmp.lt.s32.totalorder %s19, 1
      %s234 = scalar_select %p233, %s19, 1
      %s235 = scalar_lea.vmem %s2, %s234
      %p236 = scmp.lt.s32.totalorder %s20, 0
      %s237 = scalar_select %p236, %s20, 0
      %s238 = scalar_lea.vmem %s3, %s237
      %p239 = scmp.lt.s32.totalorder %s19, 1
      %s240 = scalar_select %p239, %s19, 1
      %s241 = scalar_lea.vmem %s4, %s240
      %p243 = scmp.eq.s32.totalorder %s20, 0
      // Predicated region
      $region37: #{random_mask_subgraphs.5} parent=35 // pred_check
        %p244 = pneg %p243
      $region38: #{random_mask_subgraphs.5} parent=35 // pred_check_branch
        %246 = sbr.rel (%p244) target = $region40
      $region39: #{random_mask_subgraphs.5} parent=35 // pred_region
        %247 = vst [vmem:[%s241] sm:$0x1] 0.0
      $region40: #{random_mask_subgraphs.5} parent=35 // pred_fallthru
        _
      %v248 = vld [vmem:[%s229] sm:$0x1]
      %v249 = vld [vmem:[%s232] sm:$0x1]
      %s250 = smul.u32 %s20, 128
      %v251 = vlaneseq
      %v252 = vshrl.u32 %v251, 7
      %v253 = vadd.s32 %v252, 8
      %v254 = vadd.s32 %v252, 16
      %v255 = vadd.s32 %v252, 24
      %v256 = vadd.s32 %v252, 32
      %v257 = vadd.s32 %v252, 40
      %v258 = vadd.s32 %v252, 48
      %v259 = vadd.s32 %v252, 56
      %v260 = vadd.s32 %v252, 64
      %v261 = vadd.s32 %v252, 72
      %v262 = vadd.s32 %v252, 80
      %v263 = vadd.s32 %v252, 88
      %v264 = vadd.s32 %v252, 96
      %v265 = vadd.s32 %v252, 104
      %v266 = vadd.s32 %v252, 112
      %v267 = vadd.s32 %v252, 120
      %v268 = vstv %s250
      %v269 = vadd.s32 %v268, %v252
      %v270 = vadd.s32 %v268, %v253
      %v271 = vadd.s32 %v268, %v254
      %v272 = vadd.s32 %v268, %v255
      %v273 = vadd.s32 %v268, %v256
      %v274 = vadd.s32 %v268, %v257
      %v275 = vadd.s32 %v268, %v258
      %v276 = vadd.s32 %v268, %v259
      %v277 = vadd.s32 %v268, %v260
      %v278 = vadd.s32 %v268, %v261
      %v279 = vadd.s32 %v268, %v262
      %v280 = vadd.s32 %v268, %v263
      %v281 = vadd.s32 %v268, %v264
      %v282 = vadd.s32 %v268, %v265
      %v283 = vadd.s32 %v268, %v266
      %v284 = vadd.s32 %v268, %v267
      %v285 = vlaneseq
      %v286 = vshrl.u32 %v285, 7
      %v287 = vsub.s32 0, %v286
      %v288 = vrot.slane %v248, %v287
      %vm289 = vcmp.eq.s32.totalorder %v288, %v269
      %vm290 = vcmp.eq.s32.totalorder %v288, %v270
      %vm291 = vcmp.eq.s32.totalorder %v288, %v271
      %vm292 = vcmp.eq.s32.totalorder %v288, %v272
      %vm293 = vcmp.eq.s32.totalorder %v288, %v273
      %vm294 = vcmp.eq.s32.totalorder %v288, %v274
      %vm295 = vcmp.eq.s32.totalorder %v288, %v275
      %vm296 = vcmp.eq.s32.totalorder %v288, %v276
      %vm297 = vcmp.eq.s32.totalorder %v288, %v277
      %vm298 = vcmp.eq.s32.totalorder %v288, %v278
      %vm299 = vcmp.eq.s32.totalorder %v288, %v279
      %vm300 = vcmp.eq.s32.totalorder %v288, %v280
      %vm301 = vcmp.eq.s32.totalorder %v288, %v281
      %vm302 = vcmp.eq.s32.totalorder %v288, %v282
      %vm303 = vcmp.eq.s32.totalorder %v288, %v283
      %vm304 = vcmp.eq.s32.totalorder %v288, %v284
      %v305 = vlaneseq
      %v306 = vshrl.u32 %v305, 7
      %v307 = vsub.s32 0, %v306
      %v308 = vrot.slane %v249, %v307
      %vm309 = vcmp.eq.s32.totalorder %v308, %v269
      %vm310 = vcmp.eq.s32.totalorder %v308, %v270
      %vm311 = vcmp.eq.s32.totalorder %v308, %v271
      %vm312 = vcmp.eq.s32.totalorder %v308, %v272
      %vm313 = vcmp.eq.s32.totalorder %v308, %v273
      %vm314 = vcmp.eq.s32.totalorder %v308, %v274
      %vm315 = vcmp.eq.s32.totalorder %v308, %v275
      %vm316 = vcmp.eq.s32.totalorder %v308, %v276
      %vm317 = vcmp.eq.s32.totalorder %v308, %v277
      %vm318 = vcmp.eq.s32.totalorder %v308, %v278
      %vm319 = vcmp.eq.s32.totalorder %v308, %v279
      %vm320 = vcmp.eq.s32.totalorder %v308, %v280
      %vm321 = vcmp.eq.s32.totalorder %v308, %v281
      %vm322 = vcmp.eq.s32.totalorder %v308, %v282
      %vm323 = vcmp.eq.s32.totalorder %v308, %v283
      %vm324 = vcmp.eq.s32.totalorder %v308, %v284
      %vm325 = vmor %vm289, %vm309
      %vm326 = vmor %vm290, %vm310
      %vm327 = vmor %vm291, %vm311
      %vm328 = vmor %vm292, %vm312
      %vm329 = vmor %vm293, %vm313
      %vm330 = vmor %vm294, %vm314
      %vm331 = vmor %vm295, %vm315
      %vm332 = vmor %vm296, %vm316
      %vm333 = vmor %vm297, %vm317
      %vm334 = vmor %vm298, %vm318
      %vm335 = vmor %vm299, %vm319
      %vm336 = vmor %vm300, %vm320
      %vm337 = vmor %vm301, %vm321
      %vm338 = vmor %vm302, %vm322
      %vm339 = vmor %vm303, %vm323
      %vm340 = vmor %vm304, %vm324
      %v341 = vsel %vm325, 1.0, 0.0
      %v342 = vsel %vm326, 1.0, 0.0
      %v343 = vsel %vm327, 1.0, 0.0
      %v344 = vsel %vm328, 1.0, 0.0
      %v345 = vsel %vm329, 1.0, 0.0
      %v346 = vsel %vm330, 1.0, 0.0
      %v347 = vsel %vm331, 1.0, 0.0
      %v348 = vsel %vm332, 1.0, 0.0
      %v349 = vsel %vm333, 1.0, 0.0
      %v350 = vsel %vm334, 1.0, 0.0
      %v351 = vsel %vm335, 1.0, 0.0
      %v352 = vsel %vm336, 1.0, 0.0
      %v353 = vsel %vm337, 1.0, 0.0
      %v354 = vsel %vm338, 1.0, 0.0
      %v355 = vsel %vm339, 1.0, 0.0
      %v356 = vsel %vm340, 1.0, 0.0
      %v357 = vpack.c.bf16 %v342, %v341
      %v358 = vpack.c.bf16 %v344, %v343
      %v359 = vpack.c.bf16 %v346, %v345
      %v360 = vpack.c.bf16 %v348, %v347
      %v361 = vpack.c.bf16 %v350, %v349
      %v362 = vpack.c.bf16 %v352, %v351
      %v363 = vpack.c.bf16 %v354, %v353
      %v364 = vpack.c.bf16 %v356, %v355
      %v365 = vld [vmem:[%s238] sm:$0x1]
      %v366 = vpack.c.bf16 %v365, %v365
      %v367 = vld [vmem:[%s241] sm:$0x1]
      %368 = vmatprep.subr.bf16.mxu0 0
      %369 = vmatpush1.bf16.msra.mxu0 %v357
      %370 = vmatprep.subr.bf16.mxu0 0
      %371 = vmatpush1.bf16.msra.mxu0 %v358
      %372 = vmatprep.subr.bf16.mxu0 0
      %373 = vmatpush1.bf16.msra.mxu0 %v359
      %374 = vmatprep.subr.bf16.mxu0 0
      %375 = vmatpush1.bf16.msra.mxu0 %v360
      %376 = vmatprep.subr.bf16.mxu0 0
      %377 = vmatpush1.bf16.msra.mxu0 %v361
      %378 = vmatprep.subr.bf16.mxu0 0
      %379 = vmatpush1.bf16.msra.mxu0 %v362
      %380 = vmatprep.subr.bf16.mxu0 0
      %381 = vmatpush1.bf16.msra.mxu0 %v363
      %382 = vmatprep.subr.bf16.mxu0 0
      %383 = vmatpush1.bf16.msra.mxu0 %v364
      %384 = vmatprep.subr.bf16.mxu0 0
      %385 = vmatpush1.bf16.msra.mxu0 0
      %386 = vmatprep.subr.bf16.mxu0 0
      %387 = vmatpush1.bf16.msra.mxu0 0
      %388 = vmatprep.subr.bf16.mxu0 0
      %389 = vmatpush1.bf16.msra.mxu0 0
      %390 = vmatprep.subr.bf16.mxu0 0
      %391 = vmatpush1.bf16.msra.mxu0 0
      %392 = vmatprep.subr.bf16.mxu0 0
      %393 = vmatpush1.bf16.msra.mxu0 0
      %394 = vmatprep.subr.bf16.mxu0 0
      %395 = vmatpush1.bf16.msra.mxu0 0
      %396 = vmatprep.subr.bf16.mxu0 0
      %397 = vmatpush1.bf16.msra.mxu0 0
      %398 = vmatprep.subr.bf16.mxu0 0
      %399 = vmatpush1.bf16.msra.mxu0 0
      %400 = vmatprep.mubr.bf16.mxu0 0
      %401 = vmatmul.mubr.bf16.gmra.mrb[0].mxu0 %v366
      %v402 = vpop.f32.mrb[0].mxu0
      %v403 = vadd.f32 0.0, %v402
      %v404 = vpop.f32.mrb[0].mxu0
      %v405 = vpop.f32.mrb[0].mxu0
      %v406 = vpop.f32.mrb[0].mxu0
      %407 = vdwg.mxu0
      %v408 = vadd.f32 %v367, %v403
      %409 = vst [vmem:[%s241] sm:$0x1] %v408
      // Predicated region
      $region41: #{random_mask_subgraphs.5} parent=35 // pred_check
        %p410 = pneg %p243
      $region42: #{random_mask_subgraphs.5} parent=35 // pred_check_branch
        %412 = sbr.rel (%p410) target = $region44
      $region43: #{random_mask_subgraphs.5} parent=35 // pred_region
        %v413 = vld [vmem:[%s235] sm:$0x1]
        %vm414 = vcmp.gt.f32.partialorder %v413, 0.0
        %v415 = vld [vmem:[%s241] sm:$0x1]
        %vm416 = vcmp.gt.f32.partialorder %v415, 0.0
        %vm417 = vmand %vm414, %vm416
        %v418 = vsel %vm417, 1.0, 0.0
        %419 = vst [vmem:[%s241] sm:$0x1] %v418
      $region44: #{random_mask_subgraphs.5} parent=35 // pred_fallthru
        _
      %p420 = scmp.lt.s32.totalorder %s19, 1
      %s421 = scalar_select %p420, %s19, 1
      %s422 = scalar_lea.vmem %s4, %s421
      // Predicated region
      $region45: #{random_mask_subgraphs.5} parent=35 // pred_check
        %p423 = pneg %p149
      $region46: #{random_mask_subgraphs.5} parent=35 // pred_check_branch
        %425 = sbr.rel (%p423) target = $region48
      $region47: #{random_mask_subgraphs.5} parent=35 // pred_region
        _
      $region48: #{random_mask_subgraphs.5} parent=35 // pred_fallthru
        _
    $region36: #{random_mask_subgraphs.5} parent=5 // pred_fallthru
      _
    %p426 = scmp.le.s32.totalorder 2, %s10
    // Predicated region
    $region49: #{random_mask_subgraphs.5} parent=5 // pred_check
      %p427 = pneg %p426
    $region50: #{random_mask_subgraphs.5} parent=5 // pred_check_branch
      %429 = sbr.rel (%p427) target = $region52
    $region51: #{random_mask_subgraphs.5} parent=5 // pred_region
      %s430 = ssub.s32 %s10, 2
      // Predicated region
      $region53: #{random_mask_subgraphs.5} parent=51 // pred_check
        %p431 = pneg %p155
      $region54: #{random_mask_subgraphs.5} parent=51 // pred_check_branch
        %433 = sbr.rel (%p431) target = $region56
      $region55: #{random_mask_subgraphs.5} parent=51 // pred_region
        %p434 = scmp.lt.s32.totalorder %s21, 1
        %s435 = scalar_select %p434, %s21, 1
        %s436 = scalar_lea.vmem %s4, %s435
      $region56: #{random_mask_subgraphs.5} parent=51 // pred_fallthru
        _
    $region52: #{random_mask_subgraphs.5} parent=5 // pred_fallthru
      _
  $region6: #{random_mask_subgraphs.5} parent=0 // loop_footer
    %s14 = sadd.s32 1, %s10
  $region7: #{random_mask_subgraphs.5} parent=0 // loop_footer_branch
    %9 = sbr.rel target = $region3
  $region8: #{random_mask_subgraphs.5} parent=0 // loop_exit
    _

// kernel: random_mask_subgraphs.6
$region0: #{random_mask_subgraphs.6}
  #allocation0 [shape = 'u32[]', space=smem, size = 0x4, offset = 0x4, fixed_abs, tag = 'smem constant byte address 0x4 - core index']
  #allocation1 [shape = 'u32[144,128]{1,0:T(1,128)}', space=vmem, size = 0x12000, scoped, tag = 'internal scratch']
  %s0 = inlined_call_operand.vmem [shape: s32[1,256], index: 0, kind: input, shape index: {}]
  %s1 = inlined_call_operand.vmem [shape: f32[1,256], index: 1, kind: input, shape index: {}]
  %s2 = inlined_call_operand.vmem [shape: f32[2,1,128], index: 2, kind: output, shape index: {}]
  %s3 = sld [smem:[#allocation0]]
  $region45: #{random_mask_subgraphs.6} parent=0
    _
  %s5 = ssub.s32 1, %s3
  %s6 = scalar_select 0, %s5, %s3
  loop: start=0, step=1, limit=4
  $region2: #{random_mask_subgraphs.6} parent=0 // loop_pre_header
    _
  $region3: #{random_mask_subgraphs.6} parent=0 // loop_header
    %s8 = sphi 0, %s12
    %p9 = scmp.ge.s32.totalorder %s8, 4
    %s15 = sphi 0, %s34
    %s16 = sphi 0, %s30
    %s17 = sphi 0, %s26
    %s18 = sphi 0, %s15
    %s19 = sphi 0, %s16
    %s20 = sphi 0, %s17
    %s21 = sphi 0, %s18
    %s22 = sphi 0, %s19
    %s23 = sphi 0, %s20
    %s39 = sphi 0, %s41
    %s42 = sphi 0, %s39
    %s43 = sphi 0, %s42
    %s59 = sphi 0, %s43
    %s67 = sphi 0, %s69
    %s70 = sphi 0, %s67
    %s71 = sphi 0, %s70
    %s87 = sphi 0, %s71
    %s95 = sphi 0, %s97
    %s98 = sphi 0, %s95
    %s99 = sphi 0, %s98
    %s115 = sphi 0, %s99
  $region4: #{random_mask_subgraphs.6} parent=0 // loop_header_branch
    %11 = sbr.rel (%p9) target = $region8
  $region5: #{random_mask_subgraphs.6} parent=0 // loop_body
    %s13 = ssub.s32 %s8, 1
    %s14 = ssub.s32 %s8, 2
    %s24 = sadd.s32 1, %s17
    %p25 = scmp.ge.s32.totalorder %s24, 1
    %s26 = scalar_select %p25, 0, %s24
    %s27 = sadd.s32 1, %s16
    %s28 = scalar_select %p25, %s27, %s16
    %p29 = scmp.ge.s32.totalorder %s28, 1
    %s30 = scalar_select %p29, 0, %s28
    %s31 = sadd.s32 1, %s15
    %s32 = scalar_select %p29, %s31, %s15
    %p33 = scmp.ge.s32.totalorder %s32, 2
    %s34 = scalar_select %p33, 0, %s32
    %s35 = sadd.s32 %s15, %s17
    %s36 = sadd.s32 %s34, %s26
    %s37 = ssub.s32 %s35, %s36
    %p38 = scmp.eq.s32.totalorder %s37, 0
    %s40 = sadd.s32 %s39, 1
    %s41 = scalar_select %p38, %s39, %s40
    %p44 = pneg %p38
    %p45 = scmp.eq.s32.totalorder %s8, 1
    %p46 = por %p44, %p45
    %p47 = scmp.ne.s32.totalorder %s39, %s42
    %p48 = scmp.eq.s32.totalorder %s8, 0
    %p49 = por %p47, %p48
    %p50 = scmp.ne.s32.totalorder %s39, %s42
    %p51 = scmp.eq.s32.totalorder %s13, 1
    %p52 = por %p50, %p51
    %p53 = scmp.ne.s32.totalorder %s42, %s43
    %p54 = scmp.eq.s32.totalorder %s13, 0
    %p55 = por %p53, %p54
    %p56 = scmp.ne.s32.totalorder %s42, %s43
    %p57 = scmp.eq.s32.totalorder %s14, 1
    %p58 = por %p56, %p57
    %p60 = scmp.ne.s32.totalorder %s43, %s59
    %p61 = scmp.eq.s32.totalorder %s14, 0
    %p62 = por %p60, %p61
    %s63 = sadd.s32 %s15, %s17
    %s64 = sadd.s32 %s34, %s26
    %s65 = ssub.s32 %s63, %s64
    %p66 = scmp.eq.s32.totalorder %s65, 0
    %s68 = sadd.s32 %s67, 1
    %s69 = scalar_select %p66, %s67, %s68
    %p72 = pneg %p66
    %p73 = scmp.eq.s32.totalorder %s8, 1
    %p74 = por %p72, %p73
    %p75 = scmp.ne.s32.totalorder %s67, %s70
    %p76 = scmp.eq.s32.totalorder %s8, 0
    %p77 = por %p75, %p76
    %p78 = scmp.ne.s32.totalorder %s67, %s70
    %p79 = scmp.eq.s32.totalorder %s13, 1
    %p80 = por %p78, %p79
    %p81 = scmp.ne.s32.totalorder %s70, %s71
    %p82 = scmp.eq.s32.totalorder %s13, 0
    %p83 = por %p81, %p82
    %p84 = scmp.ne.s32.totalorder %s70, %s71
    %p85 = scmp.eq.s32.totalorder %s14, 1
    %p86 = por %p84, %p85
    %p88 = scmp.ne.s32.totalorder %s71, %s87
    %p89 = scmp.eq.s32.totalorder %s14, 0
    %p90 = por %p88, %p89
    %s91 = ssub.s32 %s15, %s34
    %s92 = ssub.s32 %s16, %s30
    %s93 = sor.u32 %s91, %s92
    %p94 = scmp.eq.s32.totalorder %s93, 0
    %s96 = sadd.s32 %s95, 1
    %s97 = scalar_select %p94, %s95, %s96
    %p100 = pneg %p94
    %p101 = scmp.eq.s32.totalorder %s8, 1
    %p102 = por %p100, %p101
    %p103 = scmp.ne.s32.totalorder %s95, %s98
    %p104 = scmp.eq.s32.totalorder %s8, 0
    %p105 = por %p103, %p104
    %p106 = scmp.ne.s32.totalorder %s95, %s98
    %p107 = scmp.eq.s32.totalorder %s13, 1
    %p108 = por %p106, %p107
    %p109 = scmp.ne.s32.totalorder %s98, %s99
    %p110 = scmp.eq.s32.totalorder %s13, 0
    %p111 = por %p109, %p110
    %p112 = scmp.ne.s32.totalorder %s98, %s99
    %p113 = scmp.eq.s32.totalorder %s14, 1
    %p114 = por %p112, %p113
    %p116 = scmp.ne.s32.totalorder %s99, %s115
    %p117 = scmp.eq.s32.totalorder %s14, 0
    %p118 = por %p116, %p117
    %p119 = scmp.le.s32.totalorder 1, %s8
    %p120 = scmp.lt.s32.totalorder %s8, 3
    %p121 = pnand %p119, %p120
    %p122 = pneg %p121
    // Predicated region
    $region9: #{random_mask_subgraphs.6} parent=5 // pred_check
      _
    $region10: #{random_mask_subgraphs.6} parent=5 // pred_check_branch
      %124 = sbr.rel (%p121) target = $region12
    $region11: #{random_mask_subgraphs.6} parent=5 // pred_region
      %s125 = ssub.s32 %s8, 1
    $region12: #{random_mask_subgraphs.6} parent=5 // pred_fallthru
      _
    %p126 = scmp.lt.s32.totalorder %s8, 2
    // Predicated region
    $region13: #{random_mask_subgraphs.6} parent=5 // pred_check
      %p127 = pneg %p126
    $region14: #{random_mask_subgraphs.6} parent=5 // pred_check_branch
      %129 = sbr.rel (%p127) target = $region16
    $region15: #{random_mask_subgraphs.6} parent=5 // pred_region
      // Predicated region
      $region17: #{random_mask_subgraphs.6} parent=15 // pred_check
        %p130 = pneg %p49
      $region18: #{random_mask_subgraphs.6} parent=15 // pred_check_branch
        %132 = sbr.rel (%p130) target = $region20
      $region19: #{random_mask_subgraphs.6} parent=15 // pred_region
        %s133 = sadd.s32 %s15, %s17
        %p134 = scmp.lt.s32.totalorder %s133, 1
        %s135 = scalar_select %p134, %s133, 1
        %s136 = scalar_lea.vmem %s0, %s135
        %s137 = sadd.s32 %s15, %s17
      $region20: #{random_mask_subgraphs.6} parent=15 // pred_fallthru
        _
      // Predicated region
      $region21: #{random_mask_subgraphs.6} parent=15 // pred_check
        %p138 = pneg %p77
      $region22: #{random_mask_subgraphs.6} parent=15 // pred_check_branch
        %140 = sbr.rel (%p138) target = $region24
      $region23: #{random_mask_subgraphs.6} parent=15 // pred_region
        %s141 = sadd.s32 %s15, %s17
        %p142 = scmp.lt.s32.totalorder %s141, 1
        %s143 = scalar_select %p142, %s141, 1
        %s144 = scalar_lea.vmem %s1, %s143
        %s145 = sadd.s32 %s15, %s17
      $region24: #{random_mask_subgraphs.6} parent=15 // pred_fallthru
        _
    $region16: #{random_mask_subgraphs.6} parent=5 // pred_fallthru
      _
    %p146 = scmp.le.s32.totalorder 1, %s8
    %p147 = scmp.lt.s32.totalorder %s8, 3
    %p148 = pnand %p146, %p147
    %p149 = pneg %p148
    // Predicated region
    $region25: #{random_mask_subgraphs.6} parent=5 // pred_check
      _
    $region26: #{random_mask_subgraphs.6} parent=5 // pred_check_branch
      %151 = sbr.rel (%p148) target = $region28
    $region27: #{random_mask_subgraphs.6} parent=5 // pred_region
      %s152 = ssub.s32 %s8, 1
      %s153 = sadd.s32 %s18, %s20
      %p154 = scmp.lt.s32.totalorder %s153, 1
      %s155 = scalar_select %p154, %s153, 1
      %s156 = scalar_lea.vmem %s0, %s155
      %p157 = pneg %p55
      %p158 = pneg %p52
      %s159 = sadd.s32 %s18, %s20
      %p160 = scmp.lt.s32.totalorder %s159, 1
      %s161 = scalar_select %p160, %s159, 1
      %s162 = scalar_lea.vmem %s1, %s161
      %p163 = pneg %p83
      %p164 = pneg %p80
      %p165 = pneg %p111
      %p166 = pneg %p108
      %p167 = scmp.lt.s32.totalorder %s18, 1
      %s168 = scalar_select %p167, %s18, 1
      %p169 = scmp.lt.s32.totalorder %s19, 0
      %s170 = scalar_select %p169, %s19, 0
      %s171 = sadd.s32 %s170, %s168
      %s172 = scalar_lea.vmem %s2, %s171
      %s173 = sadd.s32 %s18, %s20
      %p174 = scmp.lt.s32.totalorder %s173, 1
      %s175 = scalar_select %p174, %s173, 1
      %s176 = scalar_lea.vmem %s0, %s175
      %s177 = sadd.s32 %s18, %s20
      %s178 = sadd.s32 %s18, %s20
      %p179 = scmp.lt.s32.totalorder %s178, 1
      %s180 = scalar_select %p179, %s178, 1
      %s181 = scalar_lea.vmem %s1, %s180
      %s182 = sadd.s32 %s18, %s20
      %p183 = scmp.lt.s32.totalorder %s18, 1
      %s184 = scalar_select %p183, %s18, 1
      %p185 = scmp.lt.s32.totalorder %s19, 0
      %s186 = scalar_select %p185, %s19, 0
      %s187 = sadd.s32 %s186, %s184
      %s188 = scalar_lea.vmem %s2, %s187
      %p190 = scmp.eq.s32.totalorder %s20, 0
      // Predicated region
      $region29: #{random_mask_subgraphs.6} parent=27 // pred_check
        %p191 = pneg %p190
      $region30: #{random_mask_subgraphs.6} parent=27 // pred_check_branch
        %193 = sbr.rel (%p191) target = $region32
      $region31: #{random_mask_subgraphs.6} parent=27 // pred_region
        %194 = vst [vmem:[%s188] sm:$0x1] 0.0
      $region32: #{random_mask_subgraphs.6} parent=27 // pred_fallthru
        _
      %s195 = smul.u32 %s19, 128
      %v196 = vlaneseq
      %v197 = vshrl.u32 %v196, 7
      %v198 = vadd.s32 %v197, 8
      %v199 = vadd.s32 %v197, 16
      %v200 = vadd.s32 %v197, 24
      %v201 = vadd.s32 %v197, 32
      %v202 = vadd.s32 %v197, 40
      %v203 = vadd.s32 %v197, 48
      %v204 = vadd.s32 %v197, 56
      %v205 = vadd.s32 %v197, 64
      %v206 = vadd.s32 %v197, 72
      %v207 = vadd.s32 %v197, 80
      %v208 = vadd.s32 %v197, 88
      %v209 = vadd.s32 %v197, 96
      %v210 = vadd.s32 %v197, 104
      %v211 = vadd.s32 %v197, 112
      %v212 = vadd.s32 %v197, 120
      %v213 = vstv %s195
      %v214 = vadd.s32 %v213, %v197
      %v215 = vadd.s32 %v213, %v198
      %v216 = vadd.s32 %v213, %v199
      %v217 = vadd.s32 %v213, %v200
      %v218 = vadd.s32 %v213, %v201
      %v219 = vadd.s32 %v213, %v202
      %v220 = vadd.s32 %v213, %v203
      %v221 = vadd.s32 %v213, %v204
      %v222 = vadd.s32 %v213, %v205
      %v223 = vadd.s32 %v213, %v206
      %v224 = vadd.s32 %v213, %v207
      %v225 = vadd.s32 %v213, %v208
      %v226 = vadd.s32 %v213, %v209
      %v227 = vadd.s32 %v213, %v210
      %v228 = vadd.s32 %v213, %v211
      %v229 = vadd.s32 %v213, %v212
      %v230 = vld [vmem:[%s176] sm:$0x1]
      %v231 = vlaneseq
      %v232 = vshrl.u32 %v231, 7
      %v233 = vsub.s32 0, %v232
      %v234 = vrot.slane %v230, %v233
      %vm235 = vcmp.eq.s32.totalorder %v234, %v214
      %vm236 = vcmp.eq.s32.totalorder %v234, %v215
      %vm237 = vcmp.eq.s32.totalorder %v234, %v216
      %vm238 = vcmp.eq.s32.totalorder %v234, %v217
      %vm239 = vcmp.eq.s32.totalorder %v234, %v218
      %vm240 = vcmp.eq.s32.totalorder %v234, %v219
      %vm241 = vcmp.eq.s32.totalorder %v234, %v220
      %vm242 = vcmp.eq.s32.totalorder %v234, %v221
      %vm243 = vcmp.eq.s32.totalorder %v234, %v222
      %vm244 = vcmp.eq.s32.totalorder %v234, %v223
      %vm245 = vcmp.eq.s32.totalorder %v234, %v224
      %vm246 = vcmp.eq.s32.totalorder %v234, %v225
      %vm247 = vcmp.eq.s32.totalorder %v234, %v226
      %vm248 = vcmp.eq.s32.totalorder %v234, %v227
      %vm249 = vcmp.eq.s32.totalorder %v234, %v228
      %vm250 = vcmp.eq.s32.totalorder %v234, %v229
      %v251 = vsel %vm235, 1.0, 0.0
      %v252 = vsel %vm236, 1.0, 0.0
      %v253 = vsel %vm237, 1.0, 0.0
      %v254 = vsel %vm238, 1.0, 0.0
      %v255 = vsel %vm239, 1.0, 0.0
      %v256 = vsel %vm240, 1.0, 0.0
      %v257 = vsel %vm241, 1.0, 0.0
      %v258 = vsel %vm242, 1.0, 0.0
      %v259 = vsel %vm243, 1.0, 0.0
      %v260 = vsel %vm244, 1.0, 0.0
      %v261 = vsel %vm245, 1.0, 0.0
      %v262 = vsel %vm246, 1.0, 0.0
      %v263 = vsel %vm247, 1.0, 0.0
      %v264 = vsel %vm248, 1.0, 0.0
      %v265 = vsel %vm249, 1.0, 0.0
      %v266 = vsel %vm250, 1.0, 0.0
      %v267 = vpack.c.bf16 %v252, %v251
      %v268 = vpack.c.bf16 %v254, %v253
      %v269 = vpack.c.bf16 %v256, %v255
      %v270 = vpack.c.bf16 %v258, %v257
      %v271 = vpack.c.bf16 %v260, %v259
      %v272 = vpack.c.bf16 %v262, %v261
      %v273 = vpack.c.bf16 %v264, %v263
      %v274 = vpack.c.bf16 %v266, %v265
      %v275 = vld [vmem:[%s181] sm:$0x1]
      %v276 = vpack.c.bf16 %v275, %v275
      %277 = vmatprep.subr.bf16.mxu0 0
      %278 = vmatpush1.bf16.xpose.msra.mxu0 %v267
      %279 = vmatprep.subr.bf16.mxu0 0
      %280 = vmatpush1.bf16.xpose.msra.mxu0 %v268
      %281 = vmatprep.subr.bf16.mxu0 0
      %282 = vmatpush1.bf16.xpose.msra.mxu0 %v269
      %283 = vmatprep.subr.bf16.mxu0 0
      %284 = vmatpush1.bf16.xpose.msra.mxu0 %v270
      %285 = vmatprep.subr.bf16.mxu0 0
      %286 = vmatpush1.bf16.xpose.msra.mxu0 %v271
      %287 = vmatprep.subr.bf16.mxu0 0
      %288 = vmatpush1.bf16.xpose.msra.mxu0 %v272
      %289 = vmatprep.subr.bf16.mxu0 0
      %290 = vmatpush1.bf16.xpose.msra.mxu0 %v273
      %291 = vmatprep.subr.bf16.mxu0 0
      %292 = vmatpush1.bf16.xpose.msra.mxu0 %v274
      %293 = vmatprep.subr.bf16.mxu0 0
      %294 = vmatpush1.bf16.xpose.msra.mxu0 0
      %295 = vmatprep.subr.bf16.mxu0 0
      %296 = vmatpush1.bf16.xpose.msra.mxu0 0
      %297 = vmatprep.subr.bf16.mxu0 0
      %298 = vmatpush1.bf16.xpose.msra.mxu0 0
      %299 = vmatprep.subr.bf16.mxu0 0
      %300 = vmatpush1.bf16.xpose.msra.mxu0 0
      %301 = vmatprep.subr.bf16.mxu0 0
      %302 = vmatpush1.bf16.xpose.msra.mxu0 0
      %303 = vmatprep.subr.bf16.mxu0 0
      %304 = vmatpush1.bf16.xpose.msra.mxu0 0
      %305 = vmatprep.subr.bf16.mxu0 0
      %306 = vmatpush1.bf16.xpose.msra.mxu0 0
      %307 = vmatprep.subr.bf16.mxu0 0
      %308 = vmatpush1.bf16.xpose.msra.mxu0 0
      %309 = vmatprep.mubr.bf16.mxu0 0
      %310 = vmatmul.mubr.bf16.gmra.mrb[0].mxu0 %v276
      %v311 = vpop.f32.mrb[0].mxu0
      %v312 = vadd.f32 0.0, %v311
      %v313 = vpop.f32.mrb[0].mxu0
      %v314 = vpop.f32.mrb[0].mxu0
      %v315 = vpop.f32.mrb[0].mxu0
      %316 = vdwg.mxu0
      %v317 = vld [vmem:[%s188] sm:$0x1]
      %v318 = vadd.f32 %v317, %v312
      %319 = vst [vmem:[%s188] sm:$0x1] %v318
      %p320 = scmp.lt.s32.totalorder %s18, 1
      %s321 = scalar_select %p320, %s18, 1
      %p322 = scmp.lt.s32.totalorder %s19, 0
      %s323 = scalar_select %p322, %s19, 0
      %s324 = sadd.s32 %s323, %s321
      %s325 = scalar_lea.vmem %s2, %s324
      // Predicated region
      $region33: #{random_mask_subgraphs.6} parent=27 // pred_check
        %p326 = pneg %p108
      $region34: #{random_mask_subgraphs.6} parent=27 // pred_check_branch
        %328 = sbr.rel (%p326) target = $region36
      $region35: #{random_mask_subgraphs.6} parent=27 // pred_region
        _
      $region36: #{random_mask_subgraphs.6} parent=27 // pred_fallthru
        _
    $region28: #{random_mask_subgraphs.6} parent=5 // pred_fallthru
      _
    %p329 = scmp.le.s32.totalorder 2, %s8
    // Predicated region
    $region37: #{random_mask_subgraphs.6} parent=5 // pred_check
      %p330 = pneg %p329
    $region38: #{random_mask_subgraphs.6} parent=5 // pred_check_branch
      %332 = sbr.rel (%p330) target = $region40
    $region39: #{random_mask_subgraphs.6} parent=5 // pred_region
      %s333 = ssub.s32 %s8, 2
      // Predicated region
      $region41: #{random_mask_subgraphs.6} parent=39 // pred_check
        %p334 = pneg %p114
      $region42: #{random_mask_subgraphs.6} parent=39 // pred_check_branch
        %336 = sbr.rel (%p334) target = $region44
      $region43: #{random_mask_subgraphs.6} parent=39 // pred_region
        %p337 = scmp.lt.s32.totalorder %s21, 1
        %s338 = scalar_select %p337, %s21, 1
        %p339 = scmp.lt.s32.totalorder %s22, 0
        %s340 = scalar_select %p339, %s22, 0
        %s341 = sadd.s32 %s340, %s338
        %s342 = scalar_lea.vmem %s2, %s341
      $region44: #{random_mask_subgraphs.6} parent=39 // pred_fallthru
        _
    $region40: #{random_mask_subgraphs.6} parent=5 // pred_fallthru
      _
  $region6: #{random_mask_subgraphs.6} parent=0 // loop_footer
    %s12 = sadd.s32 1, %s8
  $region7: #{random_mask_subgraphs.6} parent=0 // loop_footer_branch
    %7 = sbr.rel target = $region3
  $region8: #{random_mask_subgraphs.6} parent=0 // loop_exit
    _

// kernel: random_mask_subgraphs.7
$region0: #{random_mask_subgraphs.7}
  #allocation0 [shape = 'u32[]', space=smem, size = 0x4, offset = 0x4, fixed_abs, tag = 'smem constant byte address 0x4 - core index']
  #allocation1 [shape = 'u32[144,128]{1,0:T(1,128)}', space=vmem, size = 0x12000, scoped, tag = 'internal scratch']
  #allocation2 [shape = 'f32[1,128]{1,0:T(1,128)}', space=vmem, size = 0x200, scoped, tag = 'scratch operand']
  #allocation3 [shape = 'f32[1,128]{1,0:T(1,128)}', space=vmem, size = 0x200, scoped, tag = 'scratch operand']
  %s0 = inlined_call_operand.vmem [shape: s32[1,256], index: 0, kind: input, shape index: {}]
  %s1 = inlined_call_operand.vmem [shape: s32[1,256], index: 1, kind: input, shape index: {}]
  %s2 = inlined_call_operand.vmem [shape: f32[1,256], index: 2, kind: input, shape index: {}]
  %s3 = inlined_call_operand.vmem [shape: f32[1,128], index: 3, kind: input, shape index: {}]
  %s4 = inlined_call_operand.vmem [shape: f32[1,256], index: 4, kind: output, shape index: {}]
  %s5 = sld [smem:[#allocation0]]
  $region57: #{random_mask_subgraphs.7} parent=0
    _
  %s7 = ssub.s32 1, %s5
  %s8 = scalar_select 0, %s7, %s5
  loop: start=0, step=1, limit=4
  $region2: #{random_mask_subgraphs.7} parent=0 // loop_pre_header
    _
  $region3: #{random_mask_subgraphs.7} parent=0 // loop_header
    %s10 = sphi 0, %s14
    %p11 = scmp.ge.s32.totalorder %s10, 4
    %s17 = sphi 0, %s29
    %s18 = sphi 0, %s25
    %s19 = sphi 0, %s17
    %s20 = sphi 0, %s18
    %s21 = sphi 0, %s19
    %s22 = sphi 0, %s20
    %s32 = sphi 0, %s34
    %s35 = sphi 0, %s32
    %s36 = sphi 0, %s35
    %s52 = sphi 0, %s36
    %s58 = sphi 0, %s60
    %s61 = sphi 0, %s58
    %s62 = sphi 0, %s61
    %s78 = sphi 0, %s62
    %s84 = sphi 0, %s86
    %s87 = sphi 0, %s84
    %s88 = sphi 0, %s87
    %s104 = sphi 0, %s88
    %s110 = sphi 0, %s112
    %s113 = sphi 0, %s110
    %s114 = sphi 0, %s113
    %s130 = sphi 0, %s114
    %s136 = sphi 0, %s138
    %s139 = sphi 0, %s136
    %s140 = sphi 0, %s139
    %s156 = sphi 0, %s140
  $region4: #{random_mask_subgraphs.7} parent=0 // loop_header_branch
    %13 = sbr.rel (%p11) target = $region8
  $region5: #{random_mask_subgraphs.7} parent=0 // loop_body
    %s15 = ssub.s32 %s10, 1
    %s16 = ssub.s32 %s10, 2
    %s23 = sadd.s32 1, %s18
    %p24 = scmp.ge.s32.totalorder %s23, 1
    %s25 = scalar_select %p24, 0, %s23
    %s26 = sadd.s32 1, %s17
    %s27 = scalar_select %p24, %s26, %s17
    %p28 = scmp.ge.s32.totalorder %s27, 2
    %s29 = scalar_select %p28, 0, %s27
    %s30 = ssub.s32 %s17, %s29
    %p31 = scmp.eq.s32.totalorder %s30, 0
    %s33 = sadd.s32 %s32, 1
    %s34 = scalar_select %p31, %s32, %s33
    %p37 = pneg %p31
    %p38 = scmp.eq.s32.totalorder %s10, 1
    %p39 = por %p37, %p38
    %p40 = scmp.ne.s32.totalorder %s32, %s35
    %p41 = scmp.eq.s32.totalorder %s10, 0
    %p42 = por %p40, %p41
    %p43 = scmp.ne.s32.totalorder %s32, %s35
    %p44 = scmp.eq.s32.totalorder %s15, 1
    %p45 = por %p43, %p44
    %p46 = scmp.ne.s32.totalorder %s35, %s36
    %p47 = scmp.eq.s32.totalorder %s15, 0
    %p48 = por %p46, %p47
    %p49 = scmp.ne.s32.totalorder %s35, %s36
    %p50 = scmp.eq.s32.totalorder %s16, 1
    %p51 = por %p49, %p50
    %p53 = scmp.ne.s32.totalorder %s36, %s52
    %p54 = scmp.eq.s32.totalorder %s16, 0
    %p55 = por %p53, %p54
    %s56 = ssub.s32 %s17, %s29
    %p57 = scmp.eq.s32.totalorder %s56, 0
    %s59 = sadd.s32 %s58, 1
    %s60 = scalar_select %p57, %s58, %s59
    %p63 = pneg %p57
    %p64 = scmp.eq.s32.totalorder %s10, 1
    %p65 = por %p63, %p64
    %p66 = scmp.ne.s32.totalorder %s58, %s61
    %p67 = scmp.eq.s32.totalorder %s10, 0
    %p68 = por %p66, %p67
    %p69 = scmp.ne.s32.totalorder %s58, %s61
    %p70 = scmp.eq.s32.totalorder %s15, 1
    %p71 = por %p69, %p70
    %p72 = scmp.ne.s32.totalorder %s61, %s62
    %p73 = scmp.eq.s32.totalorder %s15, 0
    %p74 = por %p72, %p73
    %p75 = scmp.ne.s32.totalorder %s61, %s62
    %p76 = scmp.eq.s32.totalorder %s16, 1
    %p77 = por %p75, %p76
    %p79 = scmp.ne.s32.totalorder %s62, %s78
    %p80 = scmp.eq.s32.totalorder %s16, 0
    %p81 = por %p79, %p80
    %s82 = ssub.s32 %s17, %s29
    %p83 = scmp.eq.s32.totalorder %s82, 0
    %s85 = sadd.s32 %s84, 1
    %s86 = scalar_select %p83, %s84, %s85
    %p89 = pneg %p83
    %p90 = scmp.eq.s32.totalorder %s10, 1
    %p91 = por %p89, %p90
    %p92 = scmp.ne.s32.totalorder %s84, %s87
    %p93 = scmp.eq.s32.totalorder %s10, 0
    %p94 = por %p92, %p93
    %p95 = scmp.ne.s32.totalorder %s84, %s87
    %p96 = scmp.eq.s32.totalorder %s15, 1
    %p97 = por %p95, %p96
    %p98 = scmp.ne.s32.totalorder %s87, %s88
    %p99 = scmp.eq.s32.totalorder %s15, 0
    %p100 = por %p98, %p99
    %p101 = scmp.ne.s32.totalorder %s87, %s88
    %p102 = scmp.eq.s32.totalorder %s16, 1
    %p103 = por %p101, %p102
    %p105 = scmp.ne.s32.totalorder %s88, %s104
    %p106 = scmp.eq.s32.totalorder %s16, 0
    %p107 = por %p105, %p106
    %s108 = ssub.s32 %s18, %s25
    %p109 = scmp.eq.s32.totalorder %s108, 0
    %s111 = sadd.s32 %s110, 1
    %s112 = scalar_select %p109, %s110, %s111
    %p115 = pneg %p109
    %p116 = scmp.eq.s32.totalorder %s10, 1
    %p117 = por %p115, %p116
    %p118 = scmp.ne.s32.totalorder %s110, %s113
    %p119 = scmp.eq.s32.totalorder %s10, 0
    %p120 = por %p118, %p119
    %p121 = scmp.ne.s32.totalorder %s110, %s113
    %p122 = scmp.eq.s32.totalorder %s15, 1
    %p123 = por %p121, %p122
    %p124 = scmp.ne.s32.totalorder %s113, %s114
    %p125 = scmp.eq.s32.totalorder %s15, 0
    %p126 = por %p124, %p125
    %p127 = scmp.ne.s32.totalorder %s113, %s114
    %p128 = scmp.eq.s32.totalorder %s16, 1
    %p129 = por %p127, %p128
    %p131 = scmp.ne.s32.totalorder %s114, %s130
    %p132 = scmp.eq.s32.totalorder %s16, 0
    %p133 = por %p131, %p132
    %s134 = ssub.s32 %s17, %s29
    %p135 = scmp.eq.s32.totalorder %s134, 0
    %s137 = sadd.s32 %s136, 1
    %s138 = scalar_select %p135, %s136, %s137
    %p141 = pneg %p135
    %p142 = scmp.eq.s32.totalorder %s10, 1
    %p143 = por %p141, %p142
    %p144 = scmp.ne.s32.totalorder %s136, %s139
    %p145 = scmp.eq.s32.totalorder %s10, 0
    %p146 = por %p144, %p145
    %p147 = scmp.ne.s32.totalorder %s136, %s139
    %p148 = scmp.eq.s32.totalorder %s15, 1
    %p149 = por %p147, %p148
    %p150 = scmp.ne.s32.totalorder %s139, %s140
    %p151 = scmp.eq.s32.totalorder %s15, 0
    %p152 = por %p150, %p151
    %p153 = scmp.ne.s32.totalorder %s139, %s140
    %p154 = scmp.eq.s32.totalorder %s16, 1
    %p155 = por %p153, %p154
    %p157 = scmp.ne.s32.totalorder %s140, %s156
    %p158 = scmp.eq.s32.totalorder %s16, 0
    %p159 = por %p157, %p158
    %p160 = scmp.le.s32.totalorder 1, %s10
    %p161 = scmp.lt.s32.totalorder %s10, 3
    %p162 = pnand %p160, %p161
    %p163 = pneg %p162
    // Predicated region
    $region9: #{random_mask_subgraphs.7} parent=5 // pred_check
      _
    $region10: #{random_mask_subgraphs.7} parent=5 // pred_check_branch
      %165 = sbr.rel (%p162) target = $region12
    $region11: #{random_mask_subgraphs.7} parent=5 // pred_region
      %s166 = ssub.s32 %s10, 1
      // Predicated region
      $region13: #{random_mask_subgraphs.7} parent=11 // pred_check
        %p167 = pneg %p126
      $region14: #{random_mask_subgraphs.7} parent=11 // pred_check_branch
        %169 = sbr.rel (%p167) target = $region16
      $region15: #{random_mask_subgraphs.7} parent=11 // pred_region
        %p170 = scmp.lt.s32.totalorder %s20, 0
        %s171 = scalar_select %p170, %s20, 0
        %s172 = scalar_lea.vmem %s3, %s171
      $region16: #{random_mask_subgraphs.7} parent=11 // pred_fallthru
        _
    $region12: #{random_mask_subgraphs.7} parent=5 // pred_fallthru
      _
    %p173 = scmp.lt.s32.totalorder %s10, 2
    // Predicated region
    $region17: #{random_mask_subgraphs.7} parent=5 // pred_check
      %p174 = pneg %p173
    $region18: #{random_mask_subgraphs.7} parent=5 // pred_check_branch
      %176 = sbr.rel (%p174) target = $region20
    $region19: #{random_mask_subgraphs.7} parent=5 // pred_region
      // Predicated region
      $region21: #{random_mask_subgraphs.7} parent=19 // pred_check
        %p177 = pneg %p42
      $region22: #{random_mask_subgraphs.7} parent=19 // pred_check_branch
        %179 = sbr.rel (%p177) target = $region24
      $region23: #{random_mask_subgraphs.7} parent=19 // pred_region
        %p180 = scmp.lt.s32.totalorder %s17, 1
        %s181 = scalar_select %p180, %s17, 1
        %s182 = scalar_lea.vmem %s0, %s181
      $region24: #{random_mask_subgraphs.7} parent=19 // pred_fallthru
        _
      // Predicated region
      $region25: #{random_mask_subgraphs.7} parent=19 // pred_check
        %p183 = pneg %p68
      $region26: #{random_mask_subgraphs.7} parent=19 // pred_check_branch
        %185 = sbr.rel (%p183) target = $region28
      $region27: #{random_mask_subgraphs.7} parent=19 // pred_region
        %p186 = scmp.lt.s32.totalorder %s17, 1
        %s187 = scalar_select %p186, %s17, 1
        %s188 = scalar_lea.vmem %s1, %s187
      $region28: #{random_mask_subgraphs.7} parent=19 // pred_fallthru
        _
      // Predicated region
      $region29: #{random_mask_subgraphs.7} parent=19 // pred_check
        %p189 = pneg %p94
      $region30: #{random_mask_subgraphs.7} parent=19 // pred_check_branch
        %191 = sbr.rel (%p189) target = $region32
      $region31: #{random_mask_subgraphs.7} parent=19 // pred_region
        %p192 = scmp.lt.s32.totalorder %s17, 1
        %s193 = scalar_select %p192, %s17, 1
        %s194 = scalar_lea.vmem %s2, %s193
      $region32: #{random_mask_subgraphs.7} parent=19 // pred_fallthru
        _
    $region20: #{random_mask_subgraphs.7} parent=5 // pred_fallthru
      _
    %p195 = scmp.le.s32.totalorder 1, %s10
    %p196 = scmp.lt.s32.totalorder %s10, 3
    %p197 = pnand %p195, %p196
    %p198 = pneg %p197
    // Predicated region
    $region33: #{random_mask_subgraphs.7} parent=5 // pred_check
      _
    $region34: #{random_mask_subgraphs.7} parent=5 // pred_check_branch
      %200 = sbr.rel (%p197) target = $region36
    $region35: #{random_mask_subgraphs.7} parent=5 // pred_region
      %s201 = ssub.s32 %s10, 1
      %p202 = scmp.lt.s32.totalorder %s19, 1
      %s203 = scalar_select %p202, %s19, 1
      %s204 = scalar_lea.vmem %s0, %s203
      %p205 = pneg %p48
      %p206 = pneg %p45
      %p207 = scmp.lt.s32.totalorder %s19, 1
      %s208 = scalar_select %p207, %s19, 1
      %s209 = scalar_lea.vmem %s1, %s208
      %p210 = pneg %p74
      %p211 = pneg %p71
      %p212 = scmp.lt.s32.totalorder %s19, 1
      %s213 = scalar_select %p212, %s19, 1
      %s214 = scalar_lea.vmem %s2, %s213
      %p215 = pneg %p100
      %p216 = pneg %p97
      %p217 = scmp.lt.s32.totalorder %s20, 0
      %s218 = scalar_select %p217, %s20, 0
      %s219 = scalar_lea.vmem %s3, %s218
      %p220 = pneg %p126
      %p221 = pneg %p123
      %p222 = pneg %p152
      %p223 = pneg %p149
      %p224 = scmp.lt.s32.totalorder %s19, 1
      %s225 = scalar_select %p224, %s19, 1
      %s226 = scalar_lea.vmem %s4, %s225
      %p227 = scmp.lt.s32.totalorder %s19, 1
      %s228 = scalar_select %p227, %s19, 1
      %s229 = scalar_lea.vmem %s0, %s228
      %p230 = scmp.lt.s32.totalorder %s19, 1
      %s231 = scalar_select %p230, %s19, 1
      %s232 = scalar_lea.vmem %s1, %s231
      %p233 = scmp.lt.s32.totalorder %s19, 1
      %s234 = scalar_select %p233, %s19, 1
      %s235 = scalar_lea.vmem %s2, %s234
      %p236 = scmp.lt.s32.totalorder %s20, 0
      %s237 = scalar_select %p236, %s20, 0
      %s238 = scalar_lea.vmem %s3, %s237
      %p239 = scmp.lt.s32.totalorder %s19, 1
      %s240 = scalar_select %p239, %s19, 1
      %s241 = scalar_lea.vmem %s4, %s240
      %p243 = scmp.eq.s32.totalorder %s20, 0
      // Predicated region
      $region37: #{random_mask_subgraphs.7} parent=35 // pred_check
        %p244 = pneg %p243
      $region38: #{random_mask_subgraphs.7} parent=35 // pred_check_branch
        %246 = sbr.rel (%p244) target = $region40
      $region39: #{random_mask_subgraphs.7} parent=35 // pred_region
        %247 = vst [vmem:[#allocation2] sm:$0x1] 0.0
        %248 = vst [vmem:[#allocation3] sm:$0x1] 0.0
      $region40: #{random_mask_subgraphs.7} parent=35 // pred_fallthru
        _
      %s249 = smul.u32 %s20, 128
      %v250 = vlaneseq
      %v251 = vshrl.u32 %v250, 7
      %v252 = vadd.s32 %v251, 8
      %v253 = vadd.s32 %v251, 16
      %v254 = vadd.s32 %v251, 24
      %v255 = vadd.s32 %v251, 32
      %v256 = vadd.s32 %v251, 40
      %v257 = vadd.s32 %v251, 48
      %v258 = vadd.s32 %v251, 56
      %v259 = vadd.s32 %v251, 64
      %v260 = vadd.s32 %v251, 72
      %v261 = vadd.s32 %v251, 80
      %v262 = vadd.s32 %v251, 88
      %v263 = vadd.s32 %v251, 96
      %v264 = vadd.s32 %v251, 104
      %v265 = vadd.s32 %v251, 112
      %v266 = vadd.s32 %v251, 120
      %v267 = vstv %s249
      %v268 = vadd.s32 %v267, %v251
      %v269 = vadd.s32 %v267, %v252
      %v270 = vadd.s32 %v267, %v253
      %v271 = vadd.s32 %v267, %v254
      %v272 = vadd.s32 %v267, %v255
      %v273 = vadd.s32 %v267, %v256
      %v274 = vadd.s32 %v267, %v257
      %v275 = vadd.s32 %v267, %v258
      %v276 = vadd.s32 %v267, %v259
      %v277 = vadd.s32 %v267, %v260
      %v278 = vadd.s32 %v267, %v261
      %v279 = vadd.s32 %v267, %v262
      %v280 = vadd.s32 %v267, %v263
      %v281 = vadd.s32 %v267, %v264
      %v282 = vadd.s32 %v267, %v265
      %v283 = vadd.s32 %v267, %v266
      %v284 = vld [vmem:[%s229] sm:$0x1]
      %v285 = vld [vmem:[%s232] sm:$0x1]
      %v286 = vld [vmem:[%s238] sm:$0x1]
      %v287 = vpack.c.bf16 %v286, %v286
      %v288 = vunpack.c.l.bf16 %v287
      %v289 = vsub.f32 %v286, %v288
      %v290 = vpack.c.bf16 %v289, %v289
      %v291 = vlaneseq
      %v292 = vshrl.u32 %v291, 7
      %v293 = vsub.s32 0, %v292
      %v294 = vrot.slane %v284, %v293
      %vm295 = vcmp.eq.s32.totalorder %v294, %v268
      %vm296 = vcmp.eq.s32.totalorder %v294, %v269
      %vm297 = vcmp.eq.s32.totalorder %v294, %v270
      %vm298 = vcmp.eq.s32.totalorder %v294, %v271
      %vm299 = vcmp.eq.s32.totalorder %v294, %v272
      %vm300 = vcmp.eq.s32.totalorder %v294, %v273
      %vm301 = vcmp.eq.s32.totalorder %v294, %v274
      %vm302 = vcmp.eq.s32.totalorder %v294, %v275
      %vm303 = vcmp.eq.s32.totalorder %v294, %v276
      %vm304 = vcmp.eq.s32.totalorder %v294, %v277
      %vm305 = vcmp.eq.s32.totalorder %v294, %v278
      %vm306 = vcmp.eq.s32.totalorder %v294, %v279
      %vm307 = vcmp.eq.s32.totalorder %v294, %v280
      %vm308 = vcmp.eq.s32.totalorder %v294, %v281
      %vm309 = vcmp.eq.s32.totalorder %v294, %v282
      %vm310 = vcmp.eq.s32.totalorder %v294, %v283
      %v311 = vsel %vm295, 1.0, 0.0
      %v312 = vsel %vm296, 1.0, 0.0
      %v313 = vsel %vm297, 1.0, 0.0
      %v314 = vsel %vm298, 1.0, 0.0
      %v315 = vsel %vm299, 1.0, 0.0
      %v316 = vsel %vm300, 1.0, 0.0
      %v317 = vsel %vm301, 1.0, 0.0
      %v318 = vsel %vm302, 1.0, 0.0
      %v319 = vsel %vm303, 1.0, 0.0
      %v320 = vsel %vm304, 1.0, 0.0
      %v321 = vsel %vm305, 1.0, 0.0
      %v322 = vsel %vm306, 1.0, 0.0
      %v323 = vsel %vm307, 1.0, 0.0
      %v324 = vsel %vm308, 1.0, 0.0
      %v325 = vsel %vm309, 1.0, 0.0
      %v326 = vsel %vm310, 1.0, 0.0
      %v327 = vpack.c.bf16 %v312, %v311
      %v328 = vpack.c.bf16 %v314, %v313
      %v329 = vpack.c.bf16 %v316, %v315
      %v330 = vpack.c.bf16 %v318, %v317
      %v331 = vpack.c.bf16 %v320, %v319
      %v332 = vpack.c.bf16 %v322, %v321
      %v333 = vpack.c.bf16 %v324, %v323
      %v334 = vpack.c.bf16 %v326, %v325
      %v335 = vlaneseq
      %v336 = vshrl.u32 %v335, 7
      %v337 = vsub.s32 0, %v336
      %v338 = vrot.slane %v285, %v337
      %vm339 = vcmp.eq.s32.totalorder %v338, %v268
      %vm340 = vcmp.eq.s32.totalorder %v338, %v269
      %vm341 = vcmp.eq.s32.totalorder %v338, %v270
      %vm342 = vcmp.eq.s32.totalorder %v338, %v271
      %vm343 = vcmp.eq.s32.totalorder %v338, %v272
      %vm344 = vcmp.eq.s32.totalorder %v338, %v273
      %vm345 = vcmp.eq.s32.totalorder %v338, %v274
      %vm346 = vcmp.eq.s32.totalorder %v338, %v275
      %vm347 = vcmp.eq.s32.totalorder %v338, %v276
      %vm348 = vcmp.eq.s32.totalorder %v338, %v277
      %vm349 = vcmp.eq.s32.totalorder %v338, %v278
      %vm350 = vcmp.eq.s32.totalorder %v338, %v279
      %vm351 = vcmp.eq.s32.totalorder %v338, %v280
      %vm352 = vcmp.eq.s32.totalorder %v338, %v281
      %vm353 = vcmp.eq.s32.totalorder %v338, %v282
      %vm354 = vcmp.eq.s32.totalorder %v338, %v283
      %v355 = vsel %vm339, 1.0, 0.0
      %v356 = vsel %vm340, 1.0, 0.0
      %v357 = vsel %vm341, 1.0, 0.0
      %v358 = vsel %vm342, 1.0, 0.0
      %v359 = vsel %vm343, 1.0, 0.0
      %v360 = vsel %vm344, 1.0, 0.0
      %v361 = vsel %vm345, 1.0, 0.0
      %v362 = vsel %vm346, 1.0, 0.0
      %v363 = vsel %vm347, 1.0, 0.0
      %v364 = vsel %vm348, 1.0, 0.0
      %v365 = vsel %vm349, 1.0, 0.0
      %v366 = vsel %vm350, 1.0, 0.0
      %v367 = vsel %vm351, 1.0, 0.0
      %v368 = vsel %vm352, 1.0, 0.0
      %v369 = vsel %vm353, 1.0, 0.0
      %v370 = vsel %vm354, 1.0, 0.0
      %v371 = vpack.c.bf16 %v356, %v355
      %v372 = vpack.c.bf16 %v358, %v357
      %v373 = vpack.c.bf16 %v360, %v359
      %v374 = vpack.c.bf16 %v362, %v361
      %v375 = vpack.c.bf16 %v364, %v363
      %v376 = vpack.c.bf16 %v366, %v365
      %v377 = vpack.c.bf16 %v368, %v367
      %v378 = vpack.c.bf16 %v370, %v369
      %v379 = vld [vmem:[#allocation2] sm:$0x1]
      %380 = vmatprep.subr.bf16.mxu0 0
      %381 = vmatpush1.bf16.msra.mxu0 %v327
      %382 = vmatprep.subr.bf16.mxu0 0
      %383 = vmatpush1.bf16.msra.mxu0 %v328
      %384 = vmatprep.subr.bf16.mxu0 0
      %385 = vmatpush1.bf16.msra.mxu0 %v329
      %386 = vmatprep.subr.bf16.mxu0 0
      %387 = vmatpush1.bf16.msra.mxu0 %v330
      %388 = vmatprep.subr.bf16.mxu0 0
      %389 = vmatpush1.bf16.msra.mxu0 %v331
      %390 = vmatprep.subr.bf16.mxu0 0
      %391 = vmatpush1.bf16.msra.mxu0 %v332
      %392 = vmatprep.subr.bf16.mxu0 0
      %393 = vmatpush1.bf16.msra.mxu0 %v333
      %394 = vmatprep.subr.bf16.mxu0 0
      %395 = vmatpush1.bf16.msra.mxu0 %v334
      %396 = vmatprep.subr.bf16.mxu0 0
      %397 = vmatpush1.bf16.msra.mxu0 0
      %398 = vmatprep.subr.bf16.mxu0 0
      %399 = vmatpush1.bf16.msra.mxu0 0
      %400 = vmatprep.subr.bf16.mxu0 0
      %401 = vmatpush1.bf16.msra.mxu0 0
      %402 = vmatprep.subr.bf16.mxu0 0
      %403 = vmatpush1.bf16.msra.mxu0 0
      %404 = vmatprep.subr.bf16.mxu0 0
      %405 = vmatpush1.bf16.msra.mxu0 0
      %406 = vmatprep.subr.bf16.mxu0 0
      %407 = vmatpush1.bf16.msra.mxu0 0
      %408 = vmatprep.subr.bf16.mxu0 0
      %409 = vmatpush1.bf16.msra.mxu0 0
      %410 = vmatprep.subr.bf16.mxu0 0
      %411 = vmatpush1.bf16.msra.mxu0 0
      %412 = vmatprep.mubr.bf16.mxu0 0
      %413 = vmatmul.mubr.bf16.gmra.mrb[0].mxu0 %v290
      %v414 = vpop.f32.mrb[0].mxu0
      %v415 = vadd.f32 0.0, %v414
      %v416 = vpop.f32.mrb[0].mxu0
      %v417 = vpop.f32.mrb[0].mxu0
      %v418 = vpop.f32.mrb[0].mxu0
      %419 = vdwg.mxu0
      %420 = vmatprep.subr.bf16.mxu0 0
      %421 = vmatpush1.bf16.msra.mxu0 %v327
      %422 = vmatprep.subr.bf16.mxu0 0
      %423 = vmatpush1.bf16.msra.mxu0 %v328
      %424 = vmatprep.subr.bf16.mxu0 0
      %425 = vmatpush1.bf16.msra.mxu0 %v329
      %426 = vmatprep.subr.bf16.mxu0 0
      %427 = vmatpush1.bf16.msra.mxu0 %v330
      %428 = vmatprep.subr.bf16.mxu0 0
      %429 = vmatpush1.bf16.msra.mxu0 %v331
      %430 = vmatprep.subr.bf16.mxu0 0
      %431 = vmatpush1.bf16.msra.mxu0 %v332
      %432 = vmatprep.subr.bf16.mxu0 0
      %433 = vmatpush1.bf16.msra.mxu0 %v333
      %434 = vmatprep.subr.bf16.mxu0 0
      %435 = vmatpush1.bf16.msra.mxu0 %v334
      %436 = vmatprep.subr.bf16.mxu0 0
      %437 = vmatpush1.bf16.msra.mxu0 0
      %438 = vmatprep.subr.bf16.mxu0 0
      %439 = vmatpush1.bf16.msra.mxu0 0
      %440 = vmatprep.subr.bf16.mxu0 0
      %441 = vmatpush1.bf16.msra.mxu0 0
      %442 = vmatprep.subr.bf16.mxu0 0
      %443 = vmatpush1.bf16.msra.mxu0 0
      %444 = vmatprep.subr.bf16.mxu0 0
      %445 = vmatpush1.bf16.msra.mxu0 0
      %446 = vmatprep.subr.bf16.mxu0 0
      %447 = vmatpush1.bf16.msra.mxu0 0
      %448 = vmatprep.subr.bf16.mxu0 0
      %449 = vmatpush1.bf16.msra.mxu0 0
      %450 = vmatprep.subr.bf16.mxu0 0
      %451 = vmatpush1.bf16.msra.mxu0 0
      %452 = vmatprep.mubr.bf16.mxu0 0
      %453 = vmatmul.mubr.bf16.gmra.mrb[0].mxu0 %v287
      %v454 = vpop.f32.mrb[0].mxu0
      %v455 = vadd.f32 %v415, %v454
      %v456 = vpop.f32.mrb[0].mxu0
      %v457 = vpop.f32.mrb[0].mxu0
      %v458 = vpop.f32.mrb[0].mxu0
      %459 = vdwg.mxu0
      %v460 = vadd.f32 %v379, %v455
      %461 = vst [vmem:[#allocation2] sm:$0x1] %v460
      %v462 = vld [vmem:[#allocation3] sm:$0x1]
      %463 = vmatprep.subr.bf16.mxu0 0
      %464 = vmatpush1.bf16.msra.mxu0 %v371
      %465 = vmatprep.subr.bf16.mxu0 0
      %466 = vmatpush1.bf16.msra.mxu0 %v372
      %467 = vmatprep.subr.bf16.mxu0 0
      %468 = vmatpush1.bf16.msra.mxu0 %v373
      %469 = vmatprep.subr.bf16.mxu0 0
      %470 = vmatpush1.bf16.msra.mxu0 %v374
      %471 = vmatprep.subr.bf16.mxu0 0
      %472 = vmatpush1.bf16.msra.mxu0 %v375
      %473 = vmatprep.subr.bf16.mxu0 0
      %474 = vmatpush1.bf16.msra.mxu0 %v376
      %475 = vmatprep.subr.bf16.mxu0 0
      %476 = vmatpush1.bf16.msra.mxu0 %v377
      %477 = vmatprep.subr.bf16.mxu0 0
      %478 = vmatpush1.bf16.msra.mxu0 %v378
      %479 = vmatprep.subr.bf16.mxu0 0
      %480 = vmatpush1.bf16.msra.mxu0 0
      %481 = vmatprep.subr.bf16.mxu0 0
      %482 = vmatpush1.bf16.msra.mxu0 0
      %483 = vmatprep.subr.bf16.mxu0 0
      %484 = vmatpush1.bf16.msra.mxu0 0
      %485 = vmatprep.subr.bf16.mxu0 0
      %486 = vmatpush1.bf16.msra.mxu0 0
      %487 = vmatprep.subr.bf16.mxu0 0
      %488 = vmatpush1.bf16.msra.mxu0 0
      %489 = vmatprep.subr.bf16.mxu0 0
      %490 = vmatpush1.bf16.msra.mxu0 0
      %491 = vmatprep.subr.bf16.mxu0 0
      %492 = vmatpush1.bf16.msra.mxu0 0
      %493 = vmatprep.subr.bf16.mxu0 0
      %494 = vmatpush1.bf16.msra.mxu0 0
      %495 = vmatprep.mubr.bf16.mxu0 0
      %496 = vmatmul.mubr.bf16.gmra.mrb[0].mxu0 %v290
      %v497 = vpop.f32.mrb[0].mxu0
      %v498 = vadd.f32 0.0, %v497
      %v499 = vpop.f32.mrb[0].mxu0
      %v500 = vpop.f32.mrb[0].mxu0
      %v501 = vpop.f32.mrb[0].mxu0
      %502 = vdwg.mxu0
      %503 = vmatprep.subr.bf16.mxu0 0
      %504 = vmatpush1.bf16.msra.mxu0 %v371
      %505 = vmatprep.subr.bf16.mxu0 0
      %506 = vmatpush1.bf16.msra.mxu0 %v372
      %507 = vmatprep.subr.bf16.mxu0 0
      %508 = vmatpush1.bf16.msra.mxu0 %v373
      %509 = vmatprep.subr.bf16.mxu0 0
      %510 = vmatpush1.bf16.msra.mxu0 %v374
      %511 = vmatprep.subr.bf16.mxu0 0
      %512 = vmatpush1.bf16.msra.mxu0 %v375
      %513 = vmatprep.subr.bf16.mxu0 0
      %514 = vmatpush1.bf16.msra.mxu0 %v376
      %515 = vmatprep.subr.bf16.mxu0 0
      %516 = vmatpush1.bf16.msra.mxu0 %v377
      %517 = vmatprep.subr.bf16.mxu0 0
      %518 = vmatpush1.bf16.msra.mxu0 %v378
      %519 = vmatprep.subr.bf16.mxu0 0
      %520 = vmatpush1.bf16.msra.mxu0 0
      %521 = vmatprep.subr.bf16.mxu0 0
      %522 = vmatpush1.bf16.msra.mxu0 0
      %523 = vmatprep.subr.bf16.mxu0 0
      %524 = vmatpush1.bf16.msra.mxu0 0
      %525 = vmatprep.subr.bf16.mxu0 0
      %526 = vmatpush1.bf16.msra.mxu0 0
      %527 = vmatprep.subr.bf16.mxu0 0
      %528 = vmatpush1.bf16.msra.mxu0 0
      %529 = vmatprep.subr.bf16.mxu0 0
      %530 = vmatpush1.bf16.msra.mxu0 0
      %531 = vmatprep.subr.bf16.mxu0 0
      %532 = vmatpush1.bf16.msra.mxu0 0
      %533 = vmatprep.subr.bf16.mxu0 0
      %534 = vmatpush1.bf16.msra.mxu0 0
      %535 = vmatprep.mubr.bf16.mxu0 0
      %536 = vmatmul.mubr.bf16.gmra.mrb[0].mxu0 %v287
      %v537 = vpop.f32.mrb[0].mxu0
      %v538 = vadd.f32 %v498, %v537
      %v539 = vpop.f32.mrb[0].mxu0
      %v540 = vpop.f32.mrb[0].mxu0
      %v541 = vpop.f32.mrb[0].mxu0
      %542 = vdwg.mxu0
      %v543 = vadd.f32 %v462, %v538
      %544 = vst [vmem:[#allocation3] sm:$0x1] %v543
      // Predicated region
      $region41: #{random_mask_subgraphs.7} parent=35 // pred_check
        %p545 = pneg %p243
      $region42: #{random_mask_subgraphs.7} parent=35 // pred_check_branch
        %547 = sbr.rel (%p545) target = $region44
      $region43: #{random_mask_subgraphs.7} parent=35 // pred_region
        %v548 = vld [vmem:[%s235] sm:$0x1]
        %v549 = vld [vmem:[#allocation2] sm:$0x1]
        %v550 = vmul.f32 %v548, %v549
        %v551 = vld [vmem:[#allocation3] sm:$0x1]
        %v552 = vmul.f32 %v550, %v551
        %553 = vst [vmem:[%s241] sm:$0x1] %v552
      $region44: #{random_mask_subgraphs.7} parent=35 // pred_fallthru
        _
      %p554 = scmp.lt.s32.totalorder %s19, 1
      %s555 = scalar_select %p554, %s19, 1
      %s556 = scalar_lea.vmem %s4, %s555
      // Predicated region
      $region45: #{random_mask_subgraphs.7} parent=35 // pred_check
        %p557 = pneg %p149
      $region46: #{random_mask_subgraphs.7} parent=35 // pred_check_branch
        %559 = sbr.rel (%p557) target = $region48
      $region47: #{random_mask_subgraphs.7} parent=35 // pred_region
        _
      $region48: #{random_mask_subgraphs.7} parent=35 // pred_fallthru
        _
    $region36: #{random_mask_subgraphs.7} parent=5 // pred_fallthru
      _
    %p560 = scmp.le.s32.totalorder 2, %s10
    // Predicated region
    $region49: #{random_mask_subgraphs.7} parent=5 // pred_check
      %p561 = pneg %p560
    $region50: #{random_mask_subgraphs.7} parent=5 // pred_check_branch
      %563 = sbr.rel (%p561) target = $region52
    $region51: #{random_mask_subgraphs.7} parent=5 // pred_region
      %s564 = ssub.s32 %s10, 2
      // Predicated region
      $region53: #{random_mask_subgraphs.7} parent=51 // pred_check
        %p565 = pneg %p155
      $region54: #{random_mask_subgraphs.7} parent=51 // pred_check_branch
        %567 = sbr.rel (%p565) target = $region56
      $region55: #{random_mask_subgraphs.7} parent=51 // pred_region
        %p568 = scmp.lt.s32.totalorder %s21, 1
        %s569 = scalar_select %p568, %s21, 1
        %s570 = scalar_lea.vmem %s4, %s569
      $region56: #{random_mask_subgraphs.7} parent=51 // pred_fallthru
        _
    $region52: #{random_mask_subgraphs.7} parent=5 // pred_fallthru
      _
  $region6: #{random_mask_subgraphs.7} parent=0 // loop_footer
    %s14 = sadd.s32 1, %s10
  $region7: #{random_mask_subgraphs.7} parent=0 // loop_footer_branch
    %9 = sbr.rel target = $region3
  $region8: #{random_mask_subgraphs.7} parent=0 // loop_exit
    _

</llo_original>
